<compile_context>
chip_gen: v6e
topology: v6e:2x2x1
jax: 0.10.0
libtpu: 0.0.40
codegen_flags: <defaults>
</compile_context>

<pallas_src>
import jax
import jax.numpy as jnp
import numpy as np
from jax.experimental import pallas as pl
from jax.experimental.pallas import tpu as pltpu

HIDDEN = 32   # constant.hidden_size


def _round_up(v, m):
    return -(-v // m) * m


def _vmem_bytes(b_tile, t_chunk, H):
    """Rough lane/sublane-padded VMEM footprint (f32) of one grid step."""
    lane = lambda n: _round_up(n, 128)
    sub = lambda n: _round_up(max(n, 1), 8)
    x_blk = b_tile * sub(t_chunk) * lane(H) * 4              # input slab (double buffered)
    out_blk = b_tile * sub(t_chunk // 4) * lane(4 * H) * 4   # packed output slab (dbl buf)
    xproj = b_tile * sub(t_chunk) * lane(4 * H) * 4          # projection scratch
    small = 3 * sub(H) * lane(4 * H) * 4 + 2 * sub(b_tile) * lane(H) * 4
    return 2 * x_blk + 2 * out_blk + xproj + small


def _lstm_chunk_kernel(x_ref, wih_ref, whh_ref, b_ref, out_ref,
                       xproj_scr, h_scr, c_scr):
    """Grid = (batch_tiles ["parallel"], time_chunks ["arbitrary", innermost]).

    x_ref    : (b_tile, t_chunk, H)        raw input slab
    wih_ref  : (H, 4H)   W_ih^T, i/f/o columns pre-scaled by 0.5
    whh_ref  : (H, 4H)   W_hh^T, i/f/o columns pre-scaled by 0.5
    b_ref    : (1, 4H)   b_ih + b_hh, i/f/o entries pre-scaled by 0.5
    out_ref  : (b_tile, t_chunk // 4, 4H)  4 timesteps packed per 128-lane row
    xproj_scr: (b_tile, t_chunk, 4H) f32   hoisted, lane-dense input projection
    h_scr, c_scr : (b_tile, H) f32         recurrent carries across time chunks
    """
    c_idx = pl.program_id(1)

    @pl.when(c_idx == 0)
    def _():
        # State reset at the first time chunk of each batch tile. NOTE: padded
        # timesteps of a ragged last chunk pollute h/c only AFTER all valid steps;
        # this is safe only because the time axis is the innermost grid axis and
        # state is re-zeroed here per batch tile. Do not reorder the grid.
        h_scr[...] = jnp.zeros_like(h_scr)
        c_scr[...] = jnp.zeros_like(c_scr)

    b_tile, t_chunk, H = x_ref.shape

    # ---- Hoisted input projection (off the serial critical path) ----------------
    # One big MXU-friendly GEMM per chunk; bias added once per chunk (not per step).
    x_f32 = x_ref[...].astype(jnp.float32)                                 # (b, t, H)
    w_ih_b = jnp.broadcast_to(wih_ref[...][None, :, :], (b_tile, H, 4 * H))
    xproj_scr[...] = (
        jnp.einsum('bth,bhg->btg', x_f32, w_ih_b,
                   preferred_element_type=jnp.float32)
        + b_ref[...]                                                       # (1, 4H)
    )

    w_hh = whh_ref[...]                        # (H, 4H), loop-invariant, hoisted

    n_groups = t_chunk // 4                    # 4 timesteps per packed output row

    def group_step(grp, carry):
        h, c = carry
        base = pl.multiple_of(grp * 4, 4)
        xp4 = xproj_scr[:, pl.ds(base, 4), :]                  # (b, 4, 4H) lane-dense
        hs = []
        for j in range(4):
            # gates = x_proj_t + h_prev @ W_hh^T   (serial matmul: K=H=32, N=4H=128)
            gates = xp4[:, j, :] + jnp.dot(h, w_hh,
                                           preferred_element_type=jnp.float32)
            th = jnp.tanh(gates)                                # one EUP pass per step
            i_g = 0.5 * th[:, 0 * H:1 * H] + 0.5                # sigmoid via tanh (VPU fixup)
            f_g = 0.5 * th[:, 1 * H:2 * H] + 0.5
            g_g = th[:, 2 * H:3 * H]
            o_g = 0.5 * th[:, 3 * H:4 * H] + 0.5
            c = f_g * c + i_g * g_g
            h = o_g * jnp.tanh(c)
            hs.append(h)
        # Lane-dense store: 4 consecutive timesteps packed into one 128-lane row.
        out_ref[:, grp, :] = jnp.concatenate(hs, axis=-1).astype(out_ref.dtype)
        return (h, c)

    # Unroll for LLO visibility; cap when b_tile is large to avoid vreg spills.
    if n_groups <= 8:
        unroll = n_groups
    elif b_tile >= 64:
        unroll = 2 if n_groups % 2 == 0 else 1
    elif n_groups % 8 == 0:
        unroll = 8
    elif n_groups % 4 == 0:
        unroll = 4
    else:
        unroll = 1

    h_last, c_last = jax.lax.fori_loop(0, n_groups, group_step,
                                       (h_scr[...], c_scr[...]), unroll=unroll)
    h_scr[...] = h_last
    c_scr[...] = c_last


def conversation_encoder_forward(x_bth, w_ih, w_hh, b_ih, b_hh,
                                 *, t_chunk_cap=512, b_tile_cap=128):
    """Forward of ConversationEncoder (unidirectional nn.LSTM, batch_first).

    x_bth: [B, T, H];  w_ih, w_hh: [4H, H] (PyTorch layout);  b_ih, b_hh: [4H].
    Returns [B, T, H] hidden states (== conv_output of the module)."""
    B, T, H = x_bth.shape
    assert w_ih.shape == (4 * H, H) and w_hh.shape == (4 * H, H)
    assert (4 * H) % 128 == 0, "packed-lane output layout assumes 4*H is a multiple of 128"

    # --- parameter prep (tiny, once per call). Gate order (i, f, g, o); pre-scale
    # i/f/o by 0.5 so sigmoid(z) = 0.5*tanh(z/2)+0.5 needs a single in-kernel tanh.
    gate_scale = jnp.concatenate([
        jnp.full((2 * H,), 0.5, jnp.float32),   # i, f
        jnp.ones((H,), jnp.float32),            # g (tanh gate, unscaled)
        jnp.full((H,), 0.5, jnp.float32),       # o
    ])
    w_ih_t = w_ih.T.astype(jnp.float32) * gate_scale[None, :]               # (H, 4H)
    w_hh_t = w_hh.T.astype(jnp.float32) * gate_scale[None, :]               # (H, 4H)
    bias = ((b_ih + b_hh).astype(jnp.float32) * gate_scale).reshape(1, 4 * H)

    # --- pad T to a multiple of 4 so 4 timesteps pack into one 128-lane output row.
    T_pad = _round_up(T, 4)
    if T_pad != T:
        x_bth = jnp.pad(x_bth, ((0, 0), (0, T_pad - T), (0, 0)))

    # --- tiling -------------------------------------------------------------------
    # Batch tile: >= 2 tiles when B >= 16 so both v7x TensorCores get work on the
    # "parallel" axis; otherwise one maximal tile (v5e/v6e have a single TC).
    if B >= 16:
        b_tile = min(b_tile_cap, _round_up(pl.cdiv(B, 2), 8))
    else:
        b_tile = B

    # Time chunk: multiple of 32 when chunking (keeps the packed out block sublane-
    # aligned); shrink until resident slabs fit a conservative budget (v7x: 64 MiB
    # physical VMEM vs 128 MiB on v5e/v6e).
    vmem_budget = 20 * 2**20
    t_chunk = T_pad if T_pad <= t_chunk_cap else max(32, (t_chunk_cap // 32) * 32)
    while _vmem_bytes(b_tile, t_chunk, H) > vmem_budget and t_chunk > 32:
        t_chunk = max(32, ((t_chunk // 2) // 32) * 32)
    while _vmem_bytes(b_tile, t_chunk, H) > vmem_budget and b_tile > 8:
        b_tile = max(8, _round_up(b_tile // 2, 8))

    est = _vmem_bytes(b_tile, t_chunk, H)
    vmem_limit = int(min(48 * 2**20, max(2 * est, 24 * 2**20)))

    grid = (pl.cdiv(B, b_tile), pl.cdiv(T_pad, t_chunk))

    out_packed = pl.pallas_call(
        _lstm_chunk_kernel,
        out_shape=jax.ShapeDtypeStruct((B, T_pad // 4, 4 * H), x_bth.dtype),
        grid_spec=pltpu.PrefetchScalarGridSpec(
            num_scalar_prefetch=0,
            grid=grid,
            in_specs=[
                pl.BlockSpec((b_tile, t_chunk, H), lambda bi, ci: (bi, ci, 0)),
                pl.BlockSpec((H, 4 * H), lambda bi, ci: (0, 0)),
                pl.BlockSpec((H, 4 * H), lambda bi, ci: (0, 0)),
                pl.BlockSpec((1, 4 * H), lambda bi, ci: (0, 0)),
            ],
            out_specs=pl.BlockSpec((b_tile, t_chunk // 4, 4 * H),
                                   lambda bi, ci: (bi, ci, 0)),
            scratch_shapes=[
                pltpu.VMEM((b_tile, t_chunk, 4 * H), jnp.float32),  # x_proj slab
                pltpu.VMEM((b_tile, H), jnp.float32),               # h carry
                pltpu.VMEM((b_tile, H), jnp.float32),               # c carry
            ],
        ),
        compiler_params=pltpu.CompilerParams(
            # Batch tiles independent -> "parallel" (megacore-shardable on v7x);
            # the time-chunk axis carries the recurrence -> sequential "arbitrary".
            dimension_semantics=("parallel", "arbitrary"),
            vmem_limit_bytes=vmem_limit,
        ),
    )(x_bth, w_ih_t, w_hh_t, bias)

    # Unpack 4-timesteps-per-row layout back to [B, T, H] (free row-major reshape).
    out = out_packed.reshape(B, T_pad, H)
    if T_pad != T:
        out = out[:, :T, :]
    return out


def _reference_lstm(x_bth, w_ih, w_hh, b_ih, b_hh):
    """Pure-JAX reference implementing PyTorch nn.LSTM forward (1 layer, unidir)."""
    B, T, H = x_bth.shape
    wih_t = w_ih.T
    whh_t = w_hh.T
    b = b_ih + b_hh

    def step(carry, x_t):
        h, c = carry
        gates = x_t @ wih_t + h @ whh_t + b
        i = jax.nn.sigmoid(gates[:, 0 * H:1 * H])
        f = jax.nn.sigmoid(gates[:, 1 * H:2 * H])
        g = jnp.tanh(gates[:, 2 * H:3 * H])
        o = jax.nn.sigmoid(gates[:, 3 * H:4 * H])
        c = f * c + i * g
        h = o * jnp.tanh(c)
        return (h, c), h

    h0 = jnp.zeros((B, H), jnp.float32)
    c0 = jnp.zeros((B, H), jnp.float32)
    _, hs = jax.lax.scan(step, (h0, c0), jnp.transpose(x_bth, (1, 0, 2)))
    return jnp.transpose(hs, (1, 0, 2))


if __name__ == "__main__":
    H = HIDDEN
    key = jax.random.PRNGKey(0)
    kx, k1, k2, k3, k4, kx2 = jax.random.split(key, 6)

    # Deterministic parameters mimicking PyTorch's U(-1/sqrt(H), 1/sqrt(H)) init.
    bound = 1.0 / np.sqrt(H)
    w_ih = jax.random.uniform(k1, (4 * H, H), jnp.float32, -bound, bound)
    w_hh = jax.random.uniform(k2, (4 * H, H), jnp.float32, -bound, bound)
    b_ih = jax.random.uniform(k3, (4 * H,), jnp.float32, -bound, bound)
    b_hh = jax.random.uniform(k4, (4 * H,), jnp.float32, -bound, bound)

    # Primary check: batch=2, seq=8, hidden=32.
    B, T = 2, 8
    x = jax.random.normal(kx, (B, T, H), dtype=jnp.float32)
    out = jax.block_until_ready(conversation_encoder_forward(x, w_ih, w_hh, b_ih, b_hh))
    ref = jax.block_until_ready(_reference_lstm(x, w_ih, w_hh, b_ih, b_hh))
    assert out.shape == (B, T, H)
    np.testing.assert_allclose(np.asarray(out), np.asarray(ref), rtol=1e-5, atol=1e-5)

    # Ragged check: exercises T % 4 != 0 padding and a non-multiple-of-8 batch.
    B2, T2 = 3, 7
    x2 = jax.random.normal(kx2, (B2, T2, H), dtype=jnp.float32)
    out2 = jax.block_until_ready(conversation_encoder_forward(x2, w_ih, w_hh, b_ih, b_hh))
    ref2 = jax.block_until_ready(_reference_lstm(x2, w_ih, w_hh, b_ih, b_hh))
    np.testing.assert_allclose(np.asarray(out2), np.asarray(ref2), rtol=1e-5, atol=1e-5)

    print("KERNEL_OK")
</pallas_src>

<mosaic_0001>
module attributes {stable_mosaic.version = 11 : i64} {
  func.func @_lstm_chunk_kernel(%arg0: i32, %arg1: i32, %arg2: memref<2x8x32xf32, #tpu.memory_space<vmem>>, %arg3: memref<32x128xf32, #tpu.memory_space<vmem>>, %arg4: memref<32x128xf32, #tpu.memory_space<vmem>>, %arg5: memref<1x128xf32, #tpu.memory_space<vmem>>, %arg6: memref<2x2x128xf32, #tpu.memory_space<vmem>>, %arg7: memref<2x8x128xf32, #tpu.memory_space<vmem>>, %arg8: memref<2x32xf32, #tpu.memory_space<vmem>>, %arg9: memref<2x32xf32, #tpu.memory_space<vmem>>) attributes {dimension_semantics = [#tpu.dimension_semantics<parallel>, #tpu.dimension_semantics<arbitrary>], iteration_bounds = array<i64: 1, 1>, scalar_prefetch = 0 : i64, scratch_operands = 3 : i64, tpu.core_type = #tpu.core_type<tc>, window_params = [{transform_indices = @transform_0, window_bounds = array<i64: 2, 8, 32>}, {pipeline_mode = #tpu.pipeline_mode<synchronous>, transform_indices = @transform_1, window_bounds = array<i64: 32, 128>}, {pipeline_mode = #tpu.pipeline_mode<synchronous>, transform_indices = @transform_2, window_bounds = array<i64: 32, 128>}, {pipeline_mode = #tpu.pipeline_mode<synchronous>, transform_indices = @transform_3, window_bounds = array<i64: 1, 128>}, {transform_indices = @transform_4, window_bounds = array<i64: 2, 2, 128>}]} {
    %c0_i32 = arith.constant 0 : i32
    %0 = arith.cmpi eq, %arg1, %c0_i32 : i32
    %1 = arith.extui %0 : i1 to i32
    %c0_i32_0 = arith.constant 0 : i32
    %2 = arith.cmpi ne, %1, %c0_i32_0 : i32
    scf.if %2 {
      %cst_86 = arith.constant 0.000000e+00 : f32
      %245 = vector.broadcast %cst_86 : f32 to vector<2x32xf32>
      %c0_87 = arith.constant 0 : index
      %c0_88 = arith.constant 0 : index
      %246 = vector.load %arg8[%c0_87, %c0_88] : memref<2x32xf32, #tpu.memory_space<vmem>>, vector<2x32xf32>
      tpu.vector_store %arg8[%c0_87, %c0_88], %245 {strides = array<i32>} : memref<2x32xf32, #tpu.memory_space<vmem>>, vector<2x32xf32>,
      %cst_89 = arith.constant 0.000000e+00 : f32
      %247 = vector.broadcast %cst_89 : f32 to vector<2x32xf32>
      %c0_90 = arith.constant 0 : index
      %c0_91 = arith.constant 0 : index
      %248 = vector.load %arg9[%c0_90, %c0_91] : memref<2x32xf32, #tpu.memory_space<vmem>>, vector<2x32xf32>
      tpu.vector_store %arg9[%c0_90, %c0_91], %247 {strides = array<i32>} : memref<2x32xf32, #tpu.memory_space<vmem>>, vector<2x32xf32>,
    } else {
    }
    %c0 = arith.constant 0 : index
    %c0_1 = arith.constant 0 : index
    %c0_2 = arith.constant 0 : index
    %3 = vector.load %arg2[%c0, %c0_1, %c0_2] : memref<2x8x32xf32, #tpu.memory_space<vmem>>, vector<2x8x32xf32>
    %c0_3 = arith.constant 0 : index
    %c0_4 = arith.constant 0 : index
    %4 = vector.load %arg3[%c0_3, %c0_4] : memref<32x128xf32, #tpu.memory_space<vmem>>, vector<32x128xf32>
    %5 = vector.shape_cast %4 : vector<32x128xf32> to vector<1x32x128xf32>
    %6 = vector.shape_cast %5 : vector<1x32x128xf32> to vector<1x32x128xf32>
    %7 = vector.broadcast %6 : vector<1x32x128xf32> to vector<2x32x128xf32>
    "tpu.trace_start"() <{level = 10 : i32, message = "bth,bhg->btg"}> : () -> ()
    %cst = arith.constant dense<0.000000e+00> : vector<2x8x128xf32>
    %8 = tpu.matmul %3, %7, %cst {dimension_numbers = #tpu.dot_dimension_numbers<[2], [1], [1], [2], [0, 0, 0, 1, 1, 2], [0], [0]>} : vector<2x8x32xf32>, vector<2x32x128xf32>, vector<2x8x128xf32> -> vector<2x8x128xf32>
    "tpu.trace_stop"() : () -> ()
    %c0_5 = arith.constant 0 : index
    %c0_6 = arith.constant 0 : index
    %9 = vector.load %arg5[%c0_5, %c0_6] : memref<1x128xf32, #tpu.memory_space<vmem>>, vector<1x128xf32>
    %10 = vector.shape_cast %9 : vector<1x128xf32> to vector<1x1x128xf32>
    %11 = vector.broadcast %10 : vector<1x1x128xf32> to vector<2x8x128xf32>
    %12 = arith.addf %8, %11 : vector<2x8x128xf32>
    %c0_7 = arith.constant 0 : index
    %c0_8 = arith.constant 0 : index
    %c0_9 = arith.constant 0 : index
    %13 = vector.load %arg7[%c0_7, %c0_8, %c0_9] : memref<2x8x128xf32, #tpu.memory_space<vmem>>, vector<2x8x128xf32>
    tpu.vector_store %arg7[%c0_7, %c0_8, %c0_9], %12 {strides = array<i32>} : memref<2x8x128xf32, #tpu.memory_space<vmem>>, vector<2x8x128xf32>,
    %c0_10 = arith.constant 0 : index
    %c0_11 = arith.constant 0 : index
    %14 = vector.load %arg4[%c0_10, %c0_11] : memref<32x128xf32, #tpu.memory_space<vmem>>, vector<32x128xf32>
    %c0_12 = arith.constant 0 : index
    %c0_13 = arith.constant 0 : index
    %15 = vector.load %arg8[%c0_12, %c0_13] : memref<2x32xf32, #tpu.memory_space<vmem>>, vector<2x32xf32>
    %c0_14 = arith.constant 0 : index
    %c0_15 = arith.constant 0 : index
    %16 = vector.load %arg9[%c0_14, %c0_15] : memref<2x32xf32, #tpu.memory_space<vmem>>, vector<2x32xf32>
    %c0_i32_16 = arith.constant 0 : i32
    %c4_i32 = arith.constant 4 : i32
    %17 = arith.muli %c0_i32_16, %c4_i32 : i32
    %18 = tpu.assume_multiple %17, 4 : i32
    %c0_17 = arith.constant 0 : index
    %19 = arith.index_cast %18 : i32 to index
    %c0_18 = arith.constant 0 : index
    %20 = vector.load %arg7[%c0_17, %19, %c0_18] : memref<2x8x128xf32, #tpu.memory_space<vmem>>, vector<2x4x128xf32>
    %21 = vector.extract_strided_slice %20 {offsets = [0, 0, 0], sizes = [2, 1, 128], strides = [1, 1, 1]} : vector<2x4x128xf32> to vector<2x1x128xf32>
    %22 = vector.shape_cast %21 : vector<2x1x128xf32> to vector<2x128xf32>
    %cst_19 = arith.constant dense<0.000000e+00> : vector<2x128xf32>
    %23 = tpu.matmul %15, %14, %cst_19 {dimension_numbers = #tpu.dot_dimension_numbers<[1], [0], [0], [1], [0, 0, 1, 1], [], []>} : vector<2x32xf32>, vector<32x128xf32>, vector<2x128xf32> -> vector<2x128xf32>
    %24 = arith.addf %22, %23 : vector<2x128xf32>
    %25 = math.tanh %24 : vector<2x128xf32>
    %26 = vector.extract_strided_slice %25 {offsets = [0, 0], sizes = [2, 32], strides = [1, 1]} : vector<2x128xf32> to vector<2x32xf32>
    %cst_20 = arith.constant 5.000000e-01 : f32
    %27 = vector.broadcast %cst_20 : f32 to vector<2x32xf32>
    %28 = arith.mulf %27, %26 : vector<2x32xf32>
    %cst_21 = arith.constant 5.000000e-01 : f32
    %29 = vector.broadcast %cst_21 : f32 to vector<2x32xf32>
    %30 = arith.addf %28, %29 : vector<2x32xf32>
    %31 = vector.extract_strided_slice %25 {offsets = [0, 32], sizes = [2, 32], strides = [1, 1]} : vector<2x128xf32> to vector<2x32xf32>
    %cst_22 = arith.constant 5.000000e-01 : f32
    %32 = vector.broadcast %cst_22 : f32 to vector<2x32xf32>
    %33 = arith.mulf %32, %31 : vector<2x32xf32>
    %cst_23 = arith.constant 5.000000e-01 : f32
    %34 = vector.broadcast %cst_23 : f32 to vector<2x32xf32>
    %35 = arith.addf %33, %34 : vector<2x32xf32>
    %36 = vector.extract_strided_slice %25 {offsets = [0, 64], sizes = [2, 32], strides = [1, 1]} : vector<2x128xf32> to vector<2x32xf32>
    %37 = vector.extract_strided_slice %25 {offsets = [0, 96], sizes = [2, 32], strides = [1, 1]} : vector<2x128xf32> to vector<2x32xf32>
    %cst_24 = arith.constant 5.000000e-01 : f32
    %38 = vector.broadcast %cst_24 : f32 to vector<2x32xf32>
    %39 = arith.mulf %38, %37 : vector<2x32xf32>
    %cst_25 = arith.constant 5.000000e-01 : f32
    %40 = vector.broadcast %cst_25 : f32 to vector<2x32xf32>
    %41 = arith.addf %39, %40 : vector<2x32xf32>
    %42 = arith.mulf %35, %16 : vector<2x32xf32>
    %43 = arith.mulf %30, %36 : vector<2x32xf32>
    %44 = arith.addf %42, %43 : vector<2x32xf32>
    %45 = math.tanh %44 : vector<2x32xf32>
    %46 = arith.mulf %41, %45 : vector<2x32xf32>
    %47 = vector.extract_strided_slice %20 {offsets = [0, 1, 0], sizes = [2, 1, 128], strides = [1, 1, 1]} : vector<2x4x128xf32> to vector<2x1x128xf32>
    %48 = vector.shape_cast %47 : vector<2x1x128xf32> to vector<2x128xf32>
    %cst_26 = arith.constant dense<0.000000e+00> : vector<2x128xf32>
    %49 = tpu.matmul %46, %14, %cst_26 {dimension_numbers = #tpu.dot_dimension_numbers<[1], [0], [0], [1], [0, 0, 1, 1], [], []>} : vector<2x32xf32>, vector<32x128xf32>, vector<2x128xf32> -> vector<2x128xf32>
    %50 = arith.addf %48, %49 : vector<2x128xf32>
    %51 = math.tanh %50 : vector<2x128xf32>
    %52 = vector.extract_strided_slice %51 {offsets = [0, 0], sizes = [2, 32], strides = [1, 1]} : vector<2x128xf32> to vector<2x32xf32>
    %cst_27 = arith.constant 5.000000e-01 : f32
    %53 = vector.broadcast %cst_27 : f32 to vector<2x32xf32>
    %54 = arith.mulf %53, %52 : vector<2x32xf32>
    %cst_28 = arith.constant 5.000000e-01 : f32
    %55 = vector.broadcast %cst_28 : f32 to vector<2x32xf32>
    %56 = arith.addf %54, %55 : vector<2x32xf32>
    %57 = vector.extract_strided_slice %51 {offsets = [0, 32], sizes = [2, 32], strides = [1, 1]} : vector<2x128xf32> to vector<2x32xf32>
    %cst_29 = arith.constant 5.000000e-01 : f32
    %58 = vector.broadcast %cst_29 : f32 to vector<2x32xf32>
    %59 = arith.mulf %58, %57 : vector<2x32xf32>
    %cst_30 = arith.constant 5.000000e-01 : f32
    %60 = vector.broadcast %cst_30 : f32 to vector<2x32xf32>
    %61 = arith.addf %59, %60 : vector<2x32xf32>
    %62 = vector.extract_strided_slice %51 {offsets = [0, 64], sizes = [2, 32], strides = [1, 1]} : vector<2x128xf32> to vector<2x32xf32>
    %63 = vector.extract_strided_slice %51 {offsets = [0, 96], sizes = [2, 32], strides = [1, 1]} : vector<2x128xf32> to vector<2x32xf32>
    %cst_31 = arith.constant 5.000000e-01 : f32
    %64 = vector.broadcast %cst_31 : f32 to vector<2x32xf32>
    %65 = arith.mulf %64, %63 : vector<2x32xf32>
    %cst_32 = arith.constant 5.000000e-01 : f32
    %66 = vector.broadcast %cst_32 : f32 to vector<2x32xf32>
    %67 = arith.addf %65, %66 : vector<2x32xf32>
    %68 = arith.mulf %61, %44 : vector<2x32xf32>
    %69 = arith.mulf %56, %62 : vector<2x32xf32>
    %70 = arith.addf %68, %69 : vector<2x32xf32>
    %71 = math.tanh %70 : vector<2x32xf32>
    %72 = arith.mulf %67, %71 : vector<2x32xf32>
    %73 = vector.extract_strided_slice %20 {offsets = [0, 2, 0], sizes = [2, 1, 128], strides = [1, 1, 1]} : vector<2x4x128xf32> to vector<2x1x128xf32>
    %74 = vector.shape_cast %73 : vector<2x1x128xf32> to vector<2x128xf32>
    %cst_33 = arith.constant dense<0.000000e+00> : vector<2x128xf32>
    %75 = tpu.matmul %72, %14, %cst_33 {dimension_numbers = #tpu.dot_dimension_numbers<[1], [0], [0], [1], [0, 0, 1, 1], [], []>} : vector<2x32xf32>, vector<32x128xf32>, vector<2x128xf32> -> vector<2x128xf32>
    %76 = arith.addf %74, %75 : vector<2x128xf32>
    %77 = math.tanh %76 : vector<2x128xf32>
    %78 = vector.extract_strided_slice %77 {offsets = [0, 0], sizes = [2, 32], strides = [1, 1]} : vector<2x128xf32> to vector<2x32xf32>
    %cst_34 = arith.constant 5.000000e-01 : f32
    %79 = vector.broadcast %cst_34 : f32 to vector<2x32xf32>
    %80 = arith.mulf %79, %78 : vector<2x32xf32>
    %cst_35 = arith.constant 5.000000e-01 : f32
    %81 = vector.broadcast %cst_35 : f32 to vector<2x32xf32>
    %82 = arith.addf %80, %81 : vector<2x32xf32>
    %83 = vector.extract_strided_slice %77 {offsets = [0, 32], sizes = [2, 32], strides = [1, 1]} : vector<2x128xf32> to vector<2x32xf32>
    %cst_36 = arith.constant 5.000000e-01 : f32
    %84 = vector.broadcast %cst_36 : f32 to vector<2x32xf32>
    %85 = arith.mulf %84, %83 : vector<2x32xf32>
    %cst_37 = arith.constant 5.000000e-01 : f32
    %86 = vector.broadcast %cst_37 : f32 to vector<2x32xf32>
    %87 = arith.addf %85, %86 : vector<2x32xf32>
    %88 = vector.extract_strided_slice %77 {offsets = [0, 64], sizes = [2, 32], strides = [1, 1]} : vector<2x128xf32> to vector<2x32xf32>
    %89 = vector.extract_strided_slice %77 {offsets = [0, 96], sizes = [2, 32], strides = [1, 1]} : vector<2x128xf32> to vector<2x32xf32>
    %cst_38 = arith.constant 5.000000e-01 : f32
    %90 = vector.broadcast %cst_38 : f32 to vector<2x32xf32>
    %91 = arith.mulf %90, %89 : vector<2x32xf32>
    %cst_39 = arith.constant 5.000000e-01 : f32
    %92 = vector.broadcast %cst_39 : f32 to vector<2x32xf32>
    %93 = arith.addf %91, %92 : vector<2x32xf32>
    %94 = arith.mulf %87, %70 : vector<2x32xf32>
    %95 = arith.mulf %82, %88 : vector<2x32xf32>
    %96 = arith.addf %94, %95 : vector<2x32xf32>
    %97 = math.tanh %96 : vector<2x32xf32>
    %98 = arith.mulf %93, %97 : vector<2x32xf32>
    %99 = vector.extract_strided_slice %20 {offsets = [0, 3, 0], sizes = [2, 1, 128], strides = [1, 1, 1]} : vector<2x4x128xf32> to vector<2x1x128xf32>
    %100 = vector.shape_cast %99 : vector<2x1x128xf32> to vector<2x128xf32>
    %cst_40 = arith.constant dense<0.000000e+00> : vector<2x128xf32>
    %101 = tpu.matmul %98, %14, %cst_40 {dimension_numbers = #tpu.dot_dimension_numbers<[1], [0], [0], [1], [0, 0, 1, 1], [], []>} : vector<2x32xf32>, vector<32x128xf32>, vector<2x128xf32> -> vector<2x128xf32>
    %102 = arith.addf %100, %101 : vector<2x128xf32>
    %103 = math.tanh %102 : vector<2x128xf32>
    %104 = vector.extract_strided_slice %103 {offsets = [0, 0], sizes = [2, 32], strides = [1, 1]} : vector<2x128xf32> to vector<2x32xf32>
    %cst_41 = arith.constant 5.000000e-01 : f32
    %105 = vector.broadcast %cst_41 : f32 to vector<2x32xf32>
    %106 = arith.mulf %105, %104 : vector<2x32xf32>
    %cst_42 = arith.constant 5.000000e-01 : f32
    %107 = vector.broadcast %cst_42 : f32 to vector<2x32xf32>
    %108 = arith.addf %106, %107 : vector<2x32xf32>
    %109 = vector.extract_strided_slice %103 {offsets = [0, 32], sizes = [2, 32], strides = [1, 1]} : vector<2x128xf32> to vector<2x32xf32>
    %cst_43 = arith.constant 5.000000e-01 : f32
    %110 = vector.broadcast %cst_43 : f32 to vector<2x32xf32>
    %111 = arith.mulf %110, %109 : vector<2x32xf32>
    %cst_44 = arith.constant 5.000000e-01 : f32
    %112 = vector.broadcast %cst_44 : f32 to vector<2x32xf32>
    %113 = arith.addf %111, %112 : vector<2x32xf32>
    %114 = vector.extract_strided_slice %103 {offsets = [0, 64], sizes = [2, 32], strides = [1, 1]} : vector<2x128xf32> to vector<2x32xf32>
    %115 = vector.extract_strided_slice %103 {offsets = [0, 96], sizes = [2, 32], strides = [1, 1]} : vector<2x128xf32> to vector<2x32xf32>
    %cst_45 = arith.constant 5.000000e-01 : f32
    %116 = vector.broadcast %cst_45 : f32 to vector<2x32xf32>
    %117 = arith.mulf %116, %115 : vector<2x32xf32>
    %cst_46 = arith.constant 5.000000e-01 : f32
    %118 = vector.broadcast %cst_46 : f32 to vector<2x32xf32>
    %119 = arith.addf %117, %118 : vector<2x32xf32>
    %120 = arith.mulf %113, %96 : vector<2x32xf32>
    %121 = arith.mulf %108, %114 : vector<2x32xf32>
    %122 = arith.addf %120, %121 : vector<2x32xf32>
    %123 = math.tanh %122 : vector<2x32xf32>
    %124 = arith.mulf %119, %123 : vector<2x32xf32>
    %125 = tpu.concatenate %46, %72, %98, %124 in 1 : vector<2x32xf32>, vector<2x32xf32>, vector<2x32xf32>, vector<2x32xf32> -> vector<2x128xf32>
    %c0_47 = arith.constant 0 : index
    %126 = arith.index_cast %c0_i32_16 : i32 to index
    %c0_48 = arith.constant 0 : index
    %127 = vector.load %arg6[%c0_47, %126, %c0_48] : memref<2x2x128xf32, #tpu.memory_space<vmem>>, vector<2x1x128xf32>
    %128 = vector.shape_cast %127 : vector<2x1x128xf32> to vector<2x128xf32>
    %129 = vector.shape_cast %125 : vector<2x128xf32> to vector<2x1x128xf32>
    tpu.vector_store %arg6[%c0_47, %126, %c0_48], %129 {strides = array<i32>} : memref<2x2x128xf32, #tpu.memory_space<vmem>>, vector<2x1x128xf32>,
    %c1_i32 = arith.constant 1 : i32
    %c4_i32_49 = arith.constant 4 : i32
    %130 = arith.muli %c1_i32, %c4_i32_49 : i32
    %131 = tpu.assume_multiple %130, 4 : i32
    %c0_50 = arith.constant 0 : index
    %132 = arith.index_cast %131 : i32 to index
    %c0_51 = arith.constant 0 : index
    %133 = vector.load %arg7[%c0_50, %132, %c0_51] : memref<2x8x128xf32, #tpu.memory_space<vmem>>, vector<2x4x128xf32>
    %134 = vector.extract_strided_slice %133 {offsets = [0, 0, 0], sizes = [2, 1, 128], strides = [1, 1, 1]} : vector<2x4x128xf32> to vector<2x1x128xf32>
    %135 = vector.shape_cast %134 : vector<2x1x128xf32> to vector<2x128xf32>
    %cst_52 = arith.constant dense<0.000000e+00> : vector<2x128xf32>
    %136 = tpu.matmul %124, %14, %cst_52 {dimension_numbers = #tpu.dot_dimension_numbers<[1], [0], [0], [1], [0, 0, 1, 1], [], []>} : vector<2x32xf32>, vector<32x128xf32>, vector<2x128xf32> -> vector<2x128xf32>
    %137 = arith.addf %135, %136 : vector<2x128xf32>
    %138 = math.tanh %137 : vector<2x128xf32>
    %139 = vector.extract_strided_slice %138 {offsets = [0, 0], sizes = [2, 32], strides = [1, 1]} : vector<2x128xf32> to vector<2x32xf32>
    %cst_53 = arith.constant 5.000000e-01 : f32
    %140 = vector.broadcast %cst_53 : f32 to vector<2x32xf32>
    %141 = arith.mulf %140, %139 : vector<2x32xf32>
    %cst_54 = arith.constant 5.000000e-01 : f32
    %142 = vector.broadcast %cst_54 : f32 to vector<2x32xf32>
    %143 = arith.addf %141, %142 : vector<2x32xf32>
    %144 = vector.extract_strided_slice %138 {offsets = [0, 32], sizes = [2, 32], strides = [1, 1]} : vector<2x128xf32> to vector<2x32xf32>
    %cst_55 = arith.constant 5.000000e-01 : f32
    %145 = vector.broadcast %cst_55 : f32 to vector<2x32xf32>
    %146 = arith.mulf %145, %144 : vector<2x32xf32>
    %cst_56 = arith.constant 5.000000e-01 : f32
    %147 = vector.broadcast %cst_56 : f32 to vector<2x32xf32>
    %148 = arith.addf %146, %147 : vector<2x32xf32>
    %149 = vector.extract_strided_slice %138 {offsets = [0, 64], sizes = [2, 32], strides = [1, 1]} : vector<2x128xf32> to vector<2x32xf32>
    %150 = vector.extract_strided_slice %138 {offsets = [0, 96], sizes = [2, 32], strides = [1, 1]} : vector<2x128xf32> to vector<2x32xf32>
    %cst_57 = arith.constant 5.000000e-01 : f32
    %151 = vector.broadcast %cst_57 : f32 to vector<2x32xf32>
    %152 = arith.mulf %151, %150 : vector<2x32xf32>
    %cst_58 = arith.constant 5.000000e-01 : f32
    %153 = vector.broadcast %cst_58 : f32 to vector<2x32xf32>
    %154 = arith.addf %152, %153 : vector<2x32xf32>
    %155 = arith.mulf %148, %122 : vector<2x32xf32>
    %156 = arith.mulf %143, %149 : vector<2x32xf32>
    %157 = arith.addf %155, %156 : vector<2x32xf32>
    %158 = math.tanh %157 : vector<2x32xf32>
    %159 = arith.mulf %154, %158 : vector<2x32xf32>
    %160 = vector.extract_strided_slice %133 {offsets = [0, 1, 0], sizes = [2, 1, 128], strides = [1, 1, 1]} : vector<2x4x128xf32> to vector<2x1x128xf32>
    %161 = vector.shape_cast %160 : vector<2x1x128xf32> to vector<2x128xf32>
    %cst_59 = arith.constant dense<0.000000e+00> : vector<2x128xf32>
    %162 = tpu.matmul %159, %14, %cst_59 {dimension_numbers = #tpu.dot_dimension_numbers<[1], [0], [0], [1], [0, 0, 1, 1], [], []>} : vector<2x32xf32>, vector<32x128xf32>, vector<2x128xf32> -> vector<2x128xf32>
    %163 = arith.addf %161, %162 : vector<2x128xf32>
    %164 = math.tanh %163 : vector<2x128xf32>
    %165 = vector.extract_strided_slice %164 {offsets = [0, 0], sizes = [2, 32], strides = [1, 1]} : vector<2x128xf32> to vector<2x32xf32>
    %cst_60 = arith.constant 5.000000e-01 : f32
    %166 = vector.broadcast %cst_60 : f32 to vector<2x32xf32>
    %167 = arith.mulf %166, %165 : vector<2x32xf32>
    %cst_61 = arith.constant 5.000000e-01 : f32
    %168 = vector.broadcast %cst_61 : f32 to vector<2x32xf32>
    %169 = arith.addf %167, %168 : vector<2x32xf32>
    %170 = vector.extract_strided_slice %164 {offsets = [0, 32], sizes = [2, 32], strides = [1, 1]} : vector<2x128xf32> to vector<2x32xf32>
    %cst_62 = arith.constant 5.000000e-01 : f32
    %171 = vector.broadcast %cst_62 : f32 to vector<2x32xf32>
    %172 = arith.mulf %171, %170 : vector<2x32xf32>
    %cst_63 = arith.constant 5.000000e-01 : f32
    %173 = vector.broadcast %cst_63 : f32 to vector<2x32xf32>
    %174 = arith.addf %172, %173 : vector<2x32xf32>
    %175 = vector.extract_strided_slice %164 {offsets = [0, 64], sizes = [2, 32], strides = [1, 1]} : vector<2x128xf32> to vector<2x32xf32>
    %176 = vector.extract_strided_slice %164 {offsets = [0, 96], sizes = [2, 32], strides = [1, 1]} : vector<2x128xf32> to vector<2x32xf32>
    %cst_64 = arith.constant 5.000000e-01 : f32
    %177 = vector.broadcast %cst_64 : f32 to vector<2x32xf32>
    %178 = arith.mulf %177, %176 : vector<2x32xf32>
    %cst_65 = arith.constant 5.000000e-01 : f32
    %179 = vector.broadcast %cst_65 : f32 to vector<2x32xf32>
    %180 = arith.addf %178, %179 : vector<2x32xf32>
    %181 = arith.mulf %174, %157 : vector<2x32xf32>
    %182 = arith.mulf %169, %175 : vector<2x32xf32>
    %183 = arith.addf %181, %182 : vector<2x32xf32>
    %184 = math.tanh %183 : vector<2x32xf32>
    %185 = arith.mulf %180, %184 : vector<2x32xf32>
    %186 = vector.extract_strided_slice %133 {offsets = [0, 2, 0], sizes = [2, 1, 128], strides = [1, 1, 1]} : vector<2x4x128xf32> to vector<2x1x128xf32>
    %187 = vector.shape_cast %186 : vector<2x1x128xf32> to vector<2x128xf32>
    %cst_66 = arith.constant dense<0.000000e+00> : vector<2x128xf32>
    %188 = tpu.matmul %185, %14, %cst_66 {dimension_numbers = #tpu.dot_dimension_numbers<[1], [0], [0], [1], [0, 0, 1, 1], [], []>} : vector<2x32xf32>, vector<32x128xf32>, vector<2x128xf32> -> vector<2x128xf32>
    %189 = arith.addf %187, %188 : vector<2x128xf32>
    %190 = math.tanh %189 : vector<2x128xf32>
    %191 = vector.extract_strided_slice %190 {offsets = [0, 0], sizes = [2, 32], strides = [1, 1]} : vector<2x128xf32> to vector<2x32xf32>
    %cst_67 = arith.constant 5.000000e-01 : f32
    %192 = vector.broadcast %cst_67 : f32 to vector<2x32xf32>
    %193 = arith.mulf %192, %191 : vector<2x32xf32>
    %cst_68 = arith.constant 5.000000e-01 : f32
    %194 = vector.broadcast %cst_68 : f32 to vector<2x32xf32>
    %195 = arith.addf %193, %194 : vector<2x32xf32>
    %196 = vector.extract_strided_slice %190 {offsets = [0, 32], sizes = [2, 32], strides = [1, 1]} : vector<2x128xf32> to vector<2x32xf32>
    %cst_69 = arith.constant 5.000000e-01 : f32
    %197 = vector.broadcast %cst_69 : f32 to vector<2x32xf32>
    %198 = arith.mulf %197, %196 : vector<2x32xf32>
    %cst_70 = arith.constant 5.000000e-01 : f32
    %199 = vector.broadcast %cst_70 : f32 to vector<2x32xf32>
    %200 = arith.addf %198, %199 : vector<2x32xf32>
    %201 = vector.extract_strided_slice %190 {offsets = [0, 64], sizes = [2, 32], strides = [1, 1]} : vector<2x128xf32> to vector<2x32xf32>
    %202 = vector.extract_strided_slice %190 {offsets = [0, 96], sizes = [2, 32], strides = [1, 1]} : vector<2x128xf32> to vector<2x32xf32>
    %cst_71 = arith.constant 5.000000e-01 : f32
    %203 = vector.broadcast %cst_71 : f32 to vector<2x32xf32>
    %204 = arith.mulf %203, %202 : vector<2x32xf32>
    %cst_72 = arith.constant 5.000000e-01 : f32
    %205 = vector.broadcast %cst_72 : f32 to vector<2x32xf32>
    %206 = arith.addf %204, %205 : vector<2x32xf32>
    %207 = arith.mulf %200, %183 : vector<2x32xf32>
    %208 = arith.mulf %195, %201 : vector<2x32xf32>
    %209 = arith.addf %207, %208 : vector<2x32xf32>
    %210 = math.tanh %209 : vector<2x32xf32>
    %211 = arith.mulf %206, %210 : vector<2x32xf32>
    %212 = vector.extract_strided_slice %133 {offsets = [0, 3, 0], sizes = [2, 1, 128], strides = [1, 1, 1]} : vector<2x4x128xf32> to vector<2x1x128xf32>
    %213 = vector.shape_cast %212 : vector<2x1x128xf32> to vector<2x128xf32>
    %cst_73 = arith.constant dense<0.000000e+00> : vector<2x128xf32>
    %214 = tpu.matmul %211, %14, %cst_73 {dimension_numbers = #tpu.dot_dimension_numbers<[1], [0], [0], [1], [0, 0, 1, 1], [], []>} : vector<2x32xf32>, vector<32x128xf32>, vector<2x128xf32> -> vector<2x128xf32>
    %215 = arith.addf %213, %214 : vector<2x128xf32>
    %216 = math.tanh %215 : vector<2x128xf32>
    %217 = vector.extract_strided_slice %216 {offsets = [0, 0], sizes = [2, 32], strides = [1, 1]} : vector<2x128xf32> to vector<2x32xf32>
    %cst_74 = arith.constant 5.000000e-01 : f32
    %218 = vector.broadcast %cst_74 : f32 to vector<2x32xf32>
    %219 = arith.mulf %218, %217 : vector<2x32xf32>
    %cst_75 = arith.constant 5.000000e-01 : f32
    %220 = vector.broadcast %cst_75 : f32 to vector<2x32xf32>
    %221 = arith.addf %219, %220 : vector<2x32xf32>
    %222 = vector.extract_strided_slice %216 {offsets = [0, 32], sizes = [2, 32], strides = [1, 1]} : vector<2x128xf32> to vector<2x32xf32>
    %cst_76 = arith.constant 5.000000e-01 : f32
    %223 = vector.broadcast %cst_76 : f32 to vector<2x32xf32>
    %224 = arith.mulf %223, %222 : vector<2x32xf32>
    %cst_77 = arith.constant 5.000000e-01 : f32
    %225 = vector.broadcast %cst_77 : f32 to vector<2x32xf32>
    %226 = arith.addf %224, %225 : vector<2x32xf32>
    %227 = vector.extract_strided_slice %216 {offsets = [0, 64], sizes = [2, 32], strides = [1, 1]} : vector<2x128xf32> to vector<2x32xf32>
    %228 = vector.extract_strided_slice %216 {offsets = [0, 96], sizes = [2, 32], strides = [1, 1]} : vector<2x128xf32> to vector<2x32xf32>
    %cst_78 = arith.constant 5.000000e-01 : f32
    %229 = vector.broadcast %cst_78 : f32 to vector<2x32xf32>
    %230 = arith.mulf %229, %228 : vector<2x32xf32>
    %cst_79 = arith.constant 5.000000e-01 : f32
    %231 = vector.broadcast %cst_79 : f32 to vector<2x32xf32>
    %232 = arith.addf %230, %231 : vector<2x32xf32>
    %233 = arith.mulf %226, %209 : vector<2x32xf32>
    %234 = arith.mulf %221, %227 : vector<2x32xf32>
    %235 = arith.addf %233, %234 : vector<2x32xf32>
    %236 = math.tanh %235 : vector<2x32xf32>
    %237 = arith.mulf %232, %236 : vector<2x32xf32>
    %238 = tpu.concatenate %159, %185, %211, %237 in 1 : vector<2x32xf32>, vector<2x32xf32>, vector<2x32xf32>, vector<2x32xf32> -> vector<2x128xf32>
    %c0_80 = arith.constant 0 : index
    %239 = arith.index_cast %c1_i32 : i32 to index
    %c0_81 = arith.constant 0 : index
    %240 = vector.load %arg6[%c0_80, %239, %c0_81] : memref<2x2x128xf32, #tpu.memory_space<vmem>>, vector<2x1x128xf32>
    %241 = vector.shape_cast %240 : vector<2x1x128xf32> to vector<2x128xf32>
    %242 = vector.shape_cast %238 : vector<2x128xf32> to vector<2x1x128xf32>
    tpu.vector_store %arg6[%c0_80, %239, %c0_81], %242 {strides = array<i32>} : memref<2x2x128xf32, #tpu.memory_space<vmem>>, vector<2x1x128xf32>,
    %c2_i32 = arith.constant 2 : i32
    %c0_82 = arith.constant 0 : index
    %c0_83 = arith.constant 0 : index
    %243 = vector.load %arg8[%c0_82, %c0_83] : memref<2x32xf32, #tpu.memory_space<vmem>>, vector<2x32xf32>
    tpu.vector_store %arg8[%c0_82, %c0_83], %237 {strides = array<i32>} : memref<2x32xf32, #tpu.memory_space<vmem>>, vector<2x32xf32>,
    %c0_84 = arith.constant 0 : index
    %c0_85 = arith.constant 0 : index
    %244 = vector.load %arg9[%c0_84, %c0_85] : memref<2x32xf32, #tpu.memory_space<vmem>>, vector<2x32xf32>
    tpu.vector_store %arg9[%c0_84, %c0_85], %235 {strides = array<i32>} : memref<2x32xf32, #tpu.memory_space<vmem>>, vector<2x32xf32>,
    return
  }
  func.func @transform_0(%arg0: i32, %arg1: i32) -> (i32, i32, i32) {
    %c0_i32 = arith.constant 0 : i32
    %c0_i32_0 = arith.constant 0 : i32
    return %arg0, %arg1, %c0_i32 : i32, i32, i32
  }
  func.func @transform_1(%arg0: i32, %arg1: i32) -> (i32, i32) {
    %c0_i32 = arith.constant 0 : i32
    %c0_i32_0 = arith.constant 0 : i32
    %c0_i32_1 = arith.constant 0 : i32
    return %c0_i32, %c0_i32_0 : i32, i32
  }
  func.func @transform_2(%arg0: i32, %arg1: i32) -> (i32, i32) {
    %c0_i32 = arith.constant 0 : i32
    %c0_i32_0 = arith.constant 0 : i32
    %c0_i32_1 = arith.constant 0 : i32
    return %c0_i32, %c0_i32_0 : i32, i32
  }
  func.func @transform_3(%arg0: i32, %arg1: i32) -> (i32, i32) {
    %c0_i32 = arith.constant 0 : i32
    %c0_i32_0 = arith.constant 0 : i32
    %c0_i32_1 = arith.constant 0 : i32
    return %c0_i32, %c0_i32_0 : i32, i32
  }
  func.func @transform_4(%arg0: i32, %arg1: i32) -> (i32, i32, i32) {
    %c0_i32 = arith.constant 0 : i32
    %c0_i32_0 = arith.constant 0 : i32
    return %arg0, %arg1, %c0_i32 : i32, i32, i32
  }
}

</mosaic_0001>

<llo_original>
// kernel: tpu_custom_call.1
$region0: #{tpu_custom_call.1}
  #allocation0 [shape = 'u32[]', space=smem, size = 0x4, offset = 0x4, fixed_abs, tag = 'smem constant byte address 0x4 - core index']
  #allocation1 [shape = 'u32[144,128]{1,0:T(1,128)}', space=vmem, size = 0x12000, scoped, tag = 'internal scratch']
  #allocation2 [shape = 'f32[2,8,128]{2,1,0:T(8,128)}', space=vmem, size = 0x2000, scoped, tag = 'scratch operand']
  #allocation3 [shape = 'f32[2,32]{1,0:T(2,128)}', space=vmem, size = 0x400, scoped, tag = 'scratch operand']
  #allocation4 [shape = 'f32[2,32]{1,0:T(2,128)}', space=vmem, size = 0x400, scoped, tag = 'scratch operand']
  %s0 = inlined_call_operand.hbm [shape: f32[2,8,32], index: 0, kind: input, shape index: {}]
  %s1 = inlined_call_operand.hbm [shape: f32[32,128], index: 1, kind: input, shape index: {}]
  %s2 = inlined_call_operand.hbm [shape: f32[32,128], index: 2, kind: input, shape index: {}]
  %s3 = inlined_call_operand.vmem [shape: f32[1,128], index: 3, kind: input, shape index: {}]
  %s4 = inlined_call_operand.hbm [shape: f32[2,2,128], index: 4, kind: output, shape index: {}]
  %s5 = sld [smem:[#allocation0]]
  $region42: #{tpu_custom_call.1} parent=0
    _
  %s7 = ssub.s32 1, %s5
  %s8 = scalar_select 0, %s7, %s5
  $region1: #{tpu_custom_call.1} parent=0
    #allocation5 [shape = 'u8[8192]{0}', space=vmem, size = 0x2000, scoped, tag = 'input window, operand 0, single buffered']
    #allocation6 [shape = 's32[1]{0}', space=sflag, size = 0x4, scoped, tag = 'scoped memory for tpu_custom_call.1']
    #allocation7 [shape = 's32[1]{0}', space=sflag, size = 0x4, scoped, tag = 'scoped memory for tpu_custom_call.1']
    #allocation8 [shape = 'u8[16384]{0}', space=vmem, size = 0x4000, scoped, tag = 'input window, operand 1, single buffered']
    #allocation9 [shape = 's32[1]{0}', space=sflag, size = 0x4, scoped, tag = 'scoped memory for tpu_custom_call.1']
    #allocation10 [shape = 'u8[16384]{0}', space=vmem, size = 0x4000, scoped, tag = 'input window, operand 2, single buffered']
    #allocation11 [shape = 'u8[2048]{0}', space=vmem, size = 0x800, scoped, tag = 'output window, operand 0, single buffered']
    %9 = vsyncpa [#allocation6], 0
    %10 = vsyncpa [#allocation9], 0
    %11 = vsyncpa [#allocation7], 0
    // Predicated region
    $region2: #{tpu_custom_call.1} parent=1 // pred_check
      _
    $region3: #{tpu_custom_call.1} parent=1 // pred_check_branch
      %13 = sbr.rel (0) target = $region5
    $region4: #{tpu_custom_call.1} parent=1 // pred_region
      %s15 = ssub.s32 256, 256
      %16 = vsyncadd [#allocation6], %s15
      %s17 = sshll.u32 [#allocation5], 4
      %s18 = int_to_ptr.vmem [resolvable:$true] %s17
      %23 = dma.hbm_to_vmem [thread:$0]  %s0, 256, %s18, [#allocation6], 128, 128, 8
    $region5: #{tpu_custom_call.1} parent=1 // pred_fallthru
      _
    // Predicated region
    $region6: #{tpu_custom_call.1} parent=1 // pred_check
      _
    $region7: #{tpu_custom_call.1} parent=1 // pred_check_branch
      %25 = sbr.rel (0) target = $region9
    $region8: #{tpu_custom_call.1} parent=1 // pred_region
      %s27 = ssub.s32 512, 512
      %28 = vsyncadd [#allocation9], %s27
      %s29 = sshll.u32 [#allocation8], 4
      %s30 = int_to_ptr.vmem [resolvable:$true] %s29
      %35 = dma.hbm_to_vmem [thread:$0]  %s1, 512, %s30, [#allocation9], 128, 128, 8
    $region9: #{tpu_custom_call.1} parent=1 // pred_fallthru
      _
    // Predicated region
    $region10: #{tpu_custom_call.1} parent=1 // pred_check
      _
    $region11: #{tpu_custom_call.1} parent=1 // pred_check_branch
      %37 = sbr.rel (0) target = $region13
    $region12: #{tpu_custom_call.1} parent=1 // pred_region
      %s39 = ssub.s32 512, 512
      %40 = vsyncadd [#allocation9], %s39
      %s41 = sshll.u32 [#allocation10], 4
      %s42 = int_to_ptr.vmem [resolvable:$true] %s41
      %47 = dma.hbm_to_vmem [thread:$0]  %s2, 512, %s42, [#allocation9], 128, 128, 8
    $region13: #{tpu_custom_call.1} parent=1 // pred_fallthru
      _
    // Predicated region
    $region14: #{tpu_custom_call.1} parent=1 // pred_check
      _
    $region15: #{tpu_custom_call.1} parent=1 // pred_check_branch
      %49 = sbr.rel (0) target = $region17
    $region16: #{tpu_custom_call.1} parent=1 // pred_region
      _
    $region17: #{tpu_custom_call.1} parent=1 // pred_fallthru
      _
    // Predicated region
    $region18: #{tpu_custom_call.1} parent=1 // pred_check
      _
    $region19: #{tpu_custom_call.1} parent=1 // pred_check_branch
      %51 = sbr.rel (0) target = $region21
    $region20: #{tpu_custom_call.1} parent=1 // pred_region
      %52 = dma.done [#allocation6], 256
    $region21: #{tpu_custom_call.1} parent=1 // pred_fallthru
      _
    // Predicated region
    $region22: #{tpu_custom_call.1} parent=1 // pred_check
      _
    $region23: #{tpu_custom_call.1} parent=1 // pred_check_branch
      %54 = sbr.rel (0) target = $region25
    $region24: #{tpu_custom_call.1} parent=1 // pred_region
      %55 = dma.done [#allocation9], 512
    $region25: #{tpu_custom_call.1} parent=1 // pred_fallthru
      _
    // Predicated region
    $region26: #{tpu_custom_call.1} parent=1 // pred_check
      _
    $region27: #{tpu_custom_call.1} parent=1 // pred_check_branch
      %57 = sbr.rel (0) target = $region29
    $region28: #{tpu_custom_call.1} parent=1 // pred_region
      %58 = dma.done [#allocation9], 512
    $region29: #{tpu_custom_call.1} parent=1 // pred_fallthru
      _
    %p59 = scmp.eq.s32.totalorder 0, 0
    // Predicated region
    $region30: #{tpu_custom_call.1} parent=1 // pred_check
      %p60 = pneg %p59
    $region31: #{tpu_custom_call.1} parent=1 // pred_check_branch
      %62 = sbr.rel (%p60) target = $region33
    $region32: #{tpu_custom_call.1} parent=1 // pred_region
      %vm63 = vcmask 254976
      %64 = vst.msk [vmem:[#allocation3] sm:$0x3] %vm63, 0.0
      %65 = vst.msk [vmem:[#allocation4] sm:$0x3] %vm63, 0.0
    $region33: #{tpu_custom_call.1} parent=1 // pred_fallthru
      _
    %v66 = vld [vmem:[#allocation5] sm:$0xff]
    %v67 = vld [vmem:[#allocation5 + $0x8] sm:$0xff]
    %v68 = vld [vmem:[#allocation8] sm:$0xff]
    %v69 = vld [vmem:[#allocation8 + $0x8] sm:$0xff]
    %v70 = vld [vmem:[#allocation8 + $0x10] sm:$0xff]
    %v71 = vld [vmem:[#allocation8 + $0x18] sm:$0xff]
    %v72 = vld [vmem:[%s3] sm:$0x1]
    %v74 = vlaneseq
    %v75 = vshrl.u32 %v74, 7
    %v76 = vsub.s32 0, %v75
    %v77 = vrot.slane %v72, %v76
    %vm79 = vcmask 261120
    %v81 = vsel %vm79, %v66, 0
    %83 = vmatprep.subr.mxu0 0.0
    %84 = vmatpush1.msra.mxu0 0.0
    %85 = vmatprep.subr.mxu0 0.0
    %86 = vmatpush1.msra.mxu0 0.0
    %87 = vmatprep.subr.mxu0 0.0
    %88 = vmatpush1.msra.mxu0 0.0
    %89 = vmatprep.subr.mxu0 0.0
    %90 = vmatpush1.msra.mxu0 0.0
    %91 = vmatprep.subr.mxu0 0.0
    %92 = vmatpush1.msra.mxu0 0.0
    %93 = vmatprep.subr.mxu0 0.0
    %94 = vmatpush1.msra.mxu0 0.0
    %95 = vmatprep.subr.mxu0 0.0
    %96 = vmatpush1.msra.mxu0 0.0
    %97 = vmatprep.subr.mxu0 0.0
    %98 = vmatpush1.msra.mxu0 0.0
    %99 = vmatprep.subr.mxu0 0.0
    %100 = vmatpush1.msra.mxu0 0.0
    %101 = vmatprep.subr.mxu0 0.0
    %102 = vmatpush1.msra.mxu0 0.0
    %103 = vmatprep.subr.mxu0 0.0
    %104 = vmatpush1.msra.mxu0 0.0
    %105 = vmatprep.subr.mxu0 0.0
    %106 = vmatpush1.msra.mxu0 0.0
    %107 = vmatprep.subr.mxu0 0.0
    %108 = vmatpush1.msra.mxu0 %v71
    %109 = vmatprep.subr.mxu0 0.0
    %110 = vmatpush1.msra.mxu0 %v70
    %111 = vmatprep.subr.mxu0 0.0
    %112 = vmatpush1.msra.mxu0 %v69
    %113 = vmatprep.subr.mxu0 0.0
    %114 = vmatpush1.msra.mxu0 %v68
    %115 = vmatprep.subr.mxu0 0.0
    %116 = vmatpush2.msra.mxu0 0.0
    %117 = vmatprep.subr.mxu0 0.0
    %118 = vmatpush2.msra.mxu0 0.0
    %119 = vmatprep.subr.mxu0 0.0
    %120 = vmatpush2.msra.mxu0 0.0
    %121 = vmatprep.subr.mxu0 0.0
    %122 = vmatpush2.msra.mxu0 0.0
    %123 = vmatprep.subr.mxu0 0.0
    %124 = vmatpush2.msra.mxu0 0.0
    %125 = vmatprep.subr.mxu0 0.0
    %126 = vmatpush2.msra.mxu0 0.0
    %127 = vmatprep.subr.mxu0 0.0
    %128 = vmatpush2.msra.mxu0 0.0
    %129 = vmatprep.subr.mxu0 0.0
    %130 = vmatpush2.msra.mxu0 0.0
    %131 = vmatprep.subr.mxu0 0.0
    %132 = vmatpush2.msra.mxu0 0.0
    %133 = vmatprep.subr.mxu0 0.0
    %134 = vmatpush2.msra.mxu0 0.0
    %135 = vmatprep.subr.mxu0 0.0
    %136 = vmatpush2.msra.mxu0 0.0
    %137 = vmatprep.subr.mxu0 0.0
    %138 = vmatpush2.msra.mxu0 0.0
    %139 = vmatprep.subr.mxu0 0.0
    %140 = vmatpush2.msra.mxu0 0.0
    %141 = vmatprep.subr.mxu0 0.0
    %142 = vmatpush2.msra.mxu0 0.0
    %143 = vmatprep.subr.mxu0 0.0
    %144 = vmatpush2.msra.mxu0 0.0
    %145 = vmatprep.subr.mxu0 0.0
    %146 = vmatpush2.msra.mxu0 0.0
    %147 = vmatprep.mubr.f32.mxu0 0.0
    %148 = vmatmul.mubr.f32.gmra.mxu0 %v81
    %v149 = vpop.f32.mrf.mxu0
    %v150 = vadd.f32 %v77, %v149
    %v151 = vpop.f32.mrf.mxu0
    %152 = vdwg.mxu0
    %v154 = vsel %vm79, %v67, 0
    %156 = vmatprep.subr.mxu0 0.0
    %157 = vmatpush1.msra.mxu0 0.0
    %158 = vmatprep.subr.mxu0 0.0
    %159 = vmatpush1.msra.mxu0 0.0
    %160 = vmatprep.subr.mxu0 0.0
    %161 = vmatpush1.msra.mxu0 0.0
    %162 = vmatprep.subr.mxu0 0.0
    %163 = vmatpush1.msra.mxu0 0.0
    %164 = vmatprep.subr.mxu0 0.0
    %165 = vmatpush1.msra.mxu0 0.0
    %166 = vmatprep.subr.mxu0 0.0
    %167 = vmatpush1.msra.mxu0 0.0
    %168 = vmatprep.subr.mxu0 0.0
    %169 = vmatpush1.msra.mxu0 0.0
    %170 = vmatprep.subr.mxu0 0.0
    %171 = vmatpush1.msra.mxu0 0.0
    %172 = vmatprep.subr.mxu0 0.0
    %173 = vmatpush1.msra.mxu0 0.0
    %174 = vmatprep.subr.mxu0 0.0
    %175 = vmatpush1.msra.mxu0 0.0
    %176 = vmatprep.subr.mxu0 0.0
    %177 = vmatpush1.msra.mxu0 0.0
    %178 = vmatprep.subr.mxu0 0.0
    %179 = vmatpush1.msra.mxu0 0.0
    %180 = vmatprep.subr.mxu0 0.0
    %181 = vmatpush1.msra.mxu0 %v71
    %182 = vmatprep.subr.mxu0 0.0
    %183 = vmatpush1.msra.mxu0 %v70
    %184 = vmatprep.subr.mxu0 0.0
    %185 = vmatpush1.msra.mxu0 %v69
    %186 = vmatprep.subr.mxu0 0.0
    %187 = vmatpush1.msra.mxu0 %v68
    %188 = vmatprep.subr.mxu0 0.0
    %189 = vmatpush2.msra.mxu0 0.0
    %190 = vmatprep.subr.mxu0 0.0
    %191 = vmatpush2.msra.mxu0 0.0
    %192 = vmatprep.subr.mxu0 0.0
    %193 = vmatpush2.msra.mxu0 0.0
    %194 = vmatprep.subr.mxu0 0.0
    %195 = vmatpush2.msra.mxu0 0.0
    %196 = vmatprep.subr.mxu0 0.0
    %197 = vmatpush2.msra.mxu0 0.0
    %198 = vmatprep.subr.mxu0 0.0
    %199 = vmatpush2.msra.mxu0 0.0
    %200 = vmatprep.subr.mxu0 0.0
    %201 = vmatpush2.msra.mxu0 0.0
    %202 = vmatprep.subr.mxu0 0.0
    %203 = vmatpush2.msra.mxu0 0.0
    %204 = vmatprep.subr.mxu0 0.0
    %205 = vmatpush2.msra.mxu0 0.0
    %206 = vmatprep.subr.mxu0 0.0
    %207 = vmatpush2.msra.mxu0 0.0
    %208 = vmatprep.subr.mxu0 0.0
    %209 = vmatpush2.msra.mxu0 0.0
    %210 = vmatprep.subr.mxu0 0.0
    %211 = vmatpush2.msra.mxu0 0.0
    %212 = vmatprep.subr.mxu0 0.0
    %213 = vmatpush2.msra.mxu0 0.0
    %214 = vmatprep.subr.mxu0 0.0
    %215 = vmatpush2.msra.mxu0 0.0
    %216 = vmatprep.subr.mxu0 0.0
    %217 = vmatpush2.msra.mxu0 0.0
    %218 = vmatprep.subr.mxu0 0.0
    %219 = vmatpush2.msra.mxu0 0.0
    %220 = vmatprep.mubr.f32.mxu0 0.0
    %221 = vmatmul.mubr.f32.gmra.mxu0 %v154
    %v222 = vpop.f32.mrf.mxu0
    %v223 = vadd.f32 %v77, %v222
    %v224 = vpop.f32.mrf.mxu0
    %225 = vdwg.mxu0
    %226 = vst [vmem:[#allocation2] sm:$0xff] %v150
    %227 = vst [vmem:[#allocation2 + $0x8] sm:$0xff] %v223
    %v228 = vld [vmem:[#allocation10] sm:$0xff]
    %v229 = vld [vmem:[#allocation10 + $0x8] sm:$0xff]
    %v230 = vld [vmem:[#allocation10 + $0x10] sm:$0xff]
    %v231 = vld [vmem:[#allocation10 + $0x18] sm:$0xff]
    %v232 = vld [vmem:[#allocation3] sm:$0x3]
    %v233 = vld [vmem:[#allocation4] sm:$0x3]
    %v234 = vld [vmem:[#allocation2] sm:$0xf]
    %v235 = vld [vmem:[#allocation2 + $0x8] sm:$0xf]
    %v237 = vsel %vm79, %v232, 0
    %239 = vmatprep.subr.mxu0 0.0
    %240 = vmatpush1.msra.mxu0 0.0
    %241 = vmatprep.subr.mxu0 0.0
    %242 = vmatpush1.msra.mxu0 0.0
    %243 = vmatprep.subr.mxu0 0.0
    %244 = vmatpush1.msra.mxu0 0.0
    %245 = vmatprep.subr.mxu0 0.0
    %246 = vmatpush1.msra.mxu0 0.0
    %247 = vmatprep.subr.mxu0 0.0
    %248 = vmatpush1.msra.mxu0 0.0
    %249 = vmatprep.subr.mxu0 0.0
    %250 = vmatpush1.msra.mxu0 0.0
    %251 = vmatprep.subr.mxu0 0.0
    %252 = vmatpush1.msra.mxu0 0.0
    %253 = vmatprep.subr.mxu0 0.0
    %254 = vmatpush1.msra.mxu0 0.0
    %255 = vmatprep.subr.mxu0 0.0
    %256 = vmatpush1.msra.mxu0 0.0
    %257 = vmatprep.subr.mxu0 0.0
    %258 = vmatpush1.msra.mxu0 0.0
    %259 = vmatprep.subr.mxu0 0.0
    %260 = vmatpush1.msra.mxu0 0.0
    %261 = vmatprep.subr.mxu0 0.0
    %262 = vmatpush1.msra.mxu0 0.0
    %263 = vmatprep.subr.mxu0 0.0
    %264 = vmatpush1.msra.mxu0 %v231
    %265 = vmatprep.subr.mxu0 0.0
    %266 = vmatpush1.msra.mxu0 %v230
    %267 = vmatprep.subr.mxu0 0.0
    %268 = vmatpush1.msra.mxu0 %v229
    %269 = vmatprep.subr.mxu0 0.0
    %270 = vmatpush1.msra.mxu0 %v228
    %271 = vmatprep.subr.mxu0 0.0
    %272 = vmatpush2.msra.mxu0 0.0
    %273 = vmatprep.subr.mxu0 0.0
    %274 = vmatpush2.msra.mxu0 0.0
    %275 = vmatprep.subr.mxu0 0.0
    %276 = vmatpush2.msra.mxu0 0.0
    %277 = vmatprep.subr.mxu0 0.0
    %278 = vmatpush2.msra.mxu0 0.0
    %279 = vmatprep.subr.mxu0 0.0
    %280 = vmatpush2.msra.mxu0 0.0
    %281 = vmatprep.subr.mxu0 0.0
    %282 = vmatpush2.msra.mxu0 0.0
    %283 = vmatprep.subr.mxu0 0.0
    %284 = vmatpush2.msra.mxu0 0.0
    %285 = vmatprep.subr.mxu0 0.0
    %286 = vmatpush2.msra.mxu0 0.0
    %287 = vmatprep.subr.mxu0 0.0
    %288 = vmatpush2.msra.mxu0 0.0
    %289 = vmatprep.subr.mxu0 0.0
    %290 = vmatpush2.msra.mxu0 0.0
    %291 = vmatprep.subr.mxu0 0.0
    %292 = vmatpush2.msra.mxu0 0.0
    %293 = vmatprep.subr.mxu0 0.0
    %294 = vmatpush2.msra.mxu0 0.0
    %295 = vmatprep.subr.mxu0 0.0
    %296 = vmatpush2.msra.mxu0 0.0
    %297 = vmatprep.subr.mxu0 0.0
    %298 = vmatpush2.msra.mxu0 0.0
    %299 = vmatprep.subr.mxu0 0.0
    %300 = vmatpush2.msra.mxu0 0.0
    %301 = vmatprep.subr.mxu0 0.0
    %302 = vmatpush2.msra.mxu0 0.0
    %303 = vmatprep.mubr.f32.mxu0 0.0
    %304 = vmatmul.mubr.f32.gmra.mxu0 %v237
    %v305 = vpop.f32.mrf.mxu0
    %v306 = vadd.f32 0.0, %v305
    %v307 = vpop.f32.mrf.mxu0
    %308 = vdwg.mxu0
    %v310 = vrot.slane %v306, 1
    %v313 = vadd.f32 %v234, %v306
    %v314 = vadd.f32 %v235, %v310
    %v315 = vtanh.pop %v313
    %v316 = vtanh.pop %v314
    %v317 = vmul.f32 %v315, 0.5
    %v318 = vmul.f32 %v316, 0.5
    %v319 = vadd.f32 %v317, 0.5
    %v320 = vadd.f32 %v318, 0.5
    %v322 = vrot.slane %v233, 1
    %323 = vrot.lane.b32.xlu0 %v233, 32
    %v324 = vpop.permute.xlu0 %323
    %325 = vrot.lane.b32.xlu0 %v322, 32
    %v326 = vpop.permute.xlu0 %325
    %v329 = vmul.f32 %v319, %v324
    %v330 = vmul.f32 %v320, %v326
    %333 = vrot.lane.b32.xlu0 %v315, 64
    %v334 = vpop.permute.xlu0 %333
    %335 = vrot.lane.b32.xlu0 %v316, 64
    %v336 = vpop.permute.xlu0 %335
    %v339 = vmul.f32 %v319, %v334
    %v340 = vmul.f32 %v320, %v336
    %343 = vrot.lane.b32.xlu0 %v339, 32
    %v344 = vpop.permute.xlu0 %343
    %345 = vrot.lane.b32.xlu0 %v340, 32
    %v346 = vpop.permute.xlu0 %345
    %v349 = vadd.f32 %v329, %v344
    %v350 = vadd.f32 %v330, %v346
    %v351 = vtanh.pop %v349
    %v352 = vtanh.pop %v350
    %355 = vrot.lane.b32.xlu0 %v351, 64
    %v356 = vpop.permute.xlu0 %355
    %357 = vrot.lane.b32.xlu0 %v352, 64
    %v358 = vpop.permute.xlu0 %357
    %v361 = vmul.f32 %v319, %v356
    %v362 = vmul.f32 %v320, %v358
    %v365 = vrot.slane %v362, 7
    %vm366 = vcmask 1041409
    %v367 = vsel %vm366, %v365, %v361
    %368 = vrot.lane.b32.xlu0 %v367, 32
    %v369 = vpop.permute.xlu0 %368
    %v370 = vsel %vm79, %v369, 0
    %372 = vmatprep.subr.mxu0 0.0
    %373 = vmatpush1.msra.mxu0 0.0
    %374 = vmatprep.subr.mxu0 0.0
    %375 = vmatpush1.msra.mxu0 0.0
    %376 = vmatprep.subr.mxu0 0.0
    %377 = vmatpush1.msra.mxu0 0.0
    %378 = vmatprep.subr.mxu0 0.0
    %379 = vmatpush1.msra.mxu0 0.0
    %380 = vmatprep.subr.mxu0 0.0
    %381 = vmatpush1.msra.mxu0 0.0
    %382 = vmatprep.subr.mxu0 0.0
    %383 = vmatpush1.msra.mxu0 0.0
    %384 = vmatprep.subr.mxu0 0.0
    %385 = vmatpush1.msra.mxu0 0.0
    %386 = vmatprep.subr.mxu0 0.0
    %387 = vmatpush1.msra.mxu0 0.0
    %388 = vmatprep.subr.mxu0 0.0
    %389 = vmatpush1.msra.mxu0 0.0
    %390 = vmatprep.subr.mxu0 0.0
    %391 = vmatpush1.msra.mxu0 0.0
    %392 = vmatprep.subr.mxu0 0.0
    %393 = vmatpush1.msra.mxu0 0.0
    %394 = vmatprep.subr.mxu0 0.0
    %395 = vmatpush1.msra.mxu0 0.0
    %396 = vmatprep.subr.mxu0 0.0
    %397 = vmatpush1.msra.mxu0 %v231
    %398 = vmatprep.subr.mxu0 0.0
    %399 = vmatpush1.msra.mxu0 %v230
    %400 = vmatprep.subr.mxu0 0.0
    %401 = vmatpush1.msra.mxu0 %v229
    %402 = vmatprep.subr.mxu0 0.0
    %403 = vmatpush1.msra.mxu0 %v228
    %404 = vmatprep.subr.mxu0 0.0
    %405 = vmatpush2.msra.mxu0 0.0
    %406 = vmatprep.subr.mxu0 0.0
    %407 = vmatpush2.msra.mxu0 0.0
    %408 = vmatprep.subr.mxu0 0.0
    %409 = vmatpush2.msra.mxu0 0.0
    %410 = vmatprep.subr.mxu0 0.0
    %411 = vmatpush2.msra.mxu0 0.0
    %412 = vmatprep.subr.mxu0 0.0
    %413 = vmatpush2.msra.mxu0 0.0
    %414 = vmatprep.subr.mxu0 0.0
    %415 = vmatpush2.msra.mxu0 0.0
    %416 = vmatprep.subr.mxu0 0.0
    %417 = vmatpush2.msra.mxu0 0.0
    %418 = vmatprep.subr.mxu0 0.0
    %419 = vmatpush2.msra.mxu0 0.0
    %420 = vmatprep.subr.mxu0 0.0
    %421 = vmatpush2.msra.mxu0 0.0
    %422 = vmatprep.subr.mxu0 0.0
    %423 = vmatpush2.msra.mxu0 0.0
    %424 = vmatprep.subr.mxu0 0.0
    %425 = vmatpush2.msra.mxu0 0.0
    %426 = vmatprep.subr.mxu0 0.0
    %427 = vmatpush2.msra.mxu0 0.0
    %428 = vmatprep.subr.mxu0 0.0
    %429 = vmatpush2.msra.mxu0 0.0
    %430 = vmatprep.subr.mxu0 0.0
    %431 = vmatpush2.msra.mxu0 0.0
    %432 = vmatprep.subr.mxu0 0.0
    %433 = vmatpush2.msra.mxu0 0.0
    %434 = vmatprep.subr.mxu0 0.0
    %435 = vmatpush2.msra.mxu0 0.0
    %436 = vmatprep.mubr.f32.mxu0 0.0
    %437 = vmatmul.mubr.f32.gmra.mxu0 %v370
    %v438 = vpop.f32.mrf.mxu0
    %v439 = vadd.f32 0.0, %v438
    %v440 = vpop.f32.mrf.mxu0
    %441 = vdwg.mxu0
    %v443 = vrot.slane %v439, 7
    %v446 = vadd.f32 %v234, %v443
    %v447 = vadd.f32 %v235, %v439
    %v448 = vtanh.pop %v446
    %v449 = vtanh.pop %v447
    %v450 = vmul.f32 %v448, 0.5
    %v451 = vmul.f32 %v449, 0.5
    %v452 = vadd.f32 %v450, 0.5
    %v453 = vadd.f32 %v451, 0.5
    %v456 = vrot.slane %v349, 7
    %v457 = vrot.slane %v350, 7
    %v460 = vmul.f32 %v452, %v456
    %v461 = vmul.f32 %v453, %v457
    %464 = vrot.lane.b32.xlu0 %v448, 64
    %v465 = vpop.permute.xlu0 %464
    %466 = vrot.lane.b32.xlu0 %v449, 64
    %v467 = vpop.permute.xlu0 %466
    %v470 = vmul.f32 %v452, %v465
    %v471 = vmul.f32 %v453, %v467
    %474 = vrot.lane.b32.xlu0 %v470, 32
    %v475 = vpop.permute.xlu0 %474
    %476 = vrot.lane.b32.xlu0 %v471, 32
    %v477 = vpop.permute.xlu0 %476
    %v480 = vadd.f32 %v460, %v475
    %v481 = vadd.f32 %v461, %v477
    %v482 = vtanh.pop %v480
    %v483 = vtanh.pop %v481
    %486 = vrot.lane.b32.xlu0 %v482, 64
    %v487 = vpop.permute.xlu0 %486
    %488 = vrot.lane.b32.xlu0 %v483, 64
    %v489 = vpop.permute.xlu0 %488
    %v492 = vmul.f32 %v452, %v487
    %v493 = vmul.f32 %v453, %v489
    %v496 = vrot.slane %v492, 1
    %v497 = vsel %vm366, %v493, %v496
    %498 = vrot.lane.b32.xlu0 %v497, 32
    %v499 = vpop.permute.xlu0 %498
    %v500 = vsel %vm79, %v499, 0
    %502 = vmatprep.subr.mxu0 0.0
    %503 = vmatpush1.msra.mxu0 0.0
    %504 = vmatprep.subr.mxu0 0.0
    %505 = vmatpush1.msra.mxu0 0.0
    %506 = vmatprep.subr.mxu0 0.0
    %507 = vmatpush1.msra.mxu0 0.0
    %508 = vmatprep.subr.mxu0 0.0
    %509 = vmatpush1.msra.mxu0 0.0
    %510 = vmatprep.subr.mxu0 0.0
    %511 = vmatpush1.msra.mxu0 0.0
    %512 = vmatprep.subr.mxu0 0.0
    %513 = vmatpush1.msra.mxu0 0.0
    %514 = vmatprep.subr.mxu0 0.0
    %515 = vmatpush1.msra.mxu0 0.0
    %516 = vmatprep.subr.mxu0 0.0
    %517 = vmatpush1.msra.mxu0 0.0
    %518 = vmatprep.subr.mxu0 0.0
    %519 = vmatpush1.msra.mxu0 0.0
    %520 = vmatprep.subr.mxu0 0.0
    %521 = vmatpush1.msra.mxu0 0.0
    %522 = vmatprep.subr.mxu0 0.0
    %523 = vmatpush1.msra.mxu0 0.0
    %524 = vmatprep.subr.mxu0 0.0
    %525 = vmatpush1.msra.mxu0 0.0
    %526 = vmatprep.subr.mxu0 0.0
    %527 = vmatpush1.msra.mxu0 %v231
    %528 = vmatprep.subr.mxu0 0.0
    %529 = vmatpush1.msra.mxu0 %v230
    %530 = vmatprep.subr.mxu0 0.0
    %531 = vmatpush1.msra.mxu0 %v229
    %532 = vmatprep.subr.mxu0 0.0
    %533 = vmatpush1.msra.mxu0 %v228
    %534 = vmatprep.subr.mxu0 0.0
    %535 = vmatpush2.msra.mxu0 0.0
    %536 = vmatprep.subr.mxu0 0.0
    %537 = vmatpush2.msra.mxu0 0.0
    %538 = vmatprep.subr.mxu0 0.0
    %539 = vmatpush2.msra.mxu0 0.0
    %540 = vmatprep.subr.mxu0 0.0
    %541 = vmatpush2.msra.mxu0 0.0
    %542 = vmatprep.subr.mxu0 0.0
    %543 = vmatpush2.msra.mxu0 0.0
    %544 = vmatprep.subr.mxu0 0.0
    %545 = vmatpush2.msra.mxu0 0.0
    %546 = vmatprep.subr.mxu0 0.0
    %547 = vmatpush2.msra.mxu0 0.0
    %548 = vmatprep.subr.mxu0 0.0
    %549 = vmatpush2.msra.mxu0 0.0
    %550 = vmatprep.subr.mxu0 0.0
    %551 = vmatpush2.msra.mxu0 0.0
    %552 = vmatprep.subr.mxu0 0.0
    %553 = vmatpush2.msra.mxu0 0.0
    %554 = vmatprep.subr.mxu0 0.0
    %555 = vmatpush2.msra.mxu0 0.0
    %556 = vmatprep.subr.mxu0 0.0
    %557 = vmatpush2.msra.mxu0 0.0
    %558 = vmatprep.subr.mxu0 0.0
    %559 = vmatpush2.msra.mxu0 0.0
    %560 = vmatprep.subr.mxu0 0.0
    %561 = vmatpush2.msra.mxu0 0.0
    %562 = vmatprep.subr.mxu0 0.0
    %563 = vmatpush2.msra.mxu0 0.0
    %564 = vmatprep.subr.mxu0 0.0
    %565 = vmatpush2.msra.mxu0 0.0
    %566 = vmatprep.mubr.f32.mxu0 0.0
    %567 = vmatmul.mubr.f32.gmra.mxu0 %v500
    %v568 = vpop.f32.mrf.mxu0
    %v569 = vadd.f32 0.0, %v568
    %v570 = vpop.f32.mrf.mxu0
    %571 = vdwg.mxu0
    %v573 = vrot.slane %v569, 6
    %v574 = vrot.slane %v569, 7
    %v577 = vadd.f32 %v234, %v573
    %v578 = vadd.f32 %v235, %v574
    %v579 = vtanh.pop %v577
    %v580 = vtanh.pop %v578
    %v581 = vmul.f32 %v579, 0.5
    %v582 = vmul.f32 %v580, 0.5
    %v583 = vadd.f32 %v581, 0.5
    %v584 = vadd.f32 %v582, 0.5
    %v587 = vrot.slane %v480, 7
    %v588 = vrot.slane %v481, 7
    %v591 = vmul.f32 %v583, %v587
    %v592 = vmul.f32 %v584, %v588
    %595 = vrot.lane.b32.xlu0 %v579, 64
    %v596 = vpop.permute.xlu0 %595
    %597 = vrot.lane.b32.xlu0 %v580, 64
    %v598 = vpop.permute.xlu0 %597
    %v601 = vmul.f32 %v583, %v596
    %v602 = vmul.f32 %v584, %v598
    %605 = vrot.lane.b32.xlu0 %v601, 32
    %v606 = vpop.permute.xlu0 %605
    %607 = vrot.lane.b32.xlu0 %v602, 32
    %v608 = vpop.permute.xlu0 %607
    %v611 = vadd.f32 %v591, %v606
    %v612 = vadd.f32 %v592, %v608
    %v613 = vtanh.pop %v611
    %v614 = vtanh.pop %v612
    %617 = vrot.lane.b32.xlu0 %v613, 64
    %v618 = vpop.permute.xlu0 %617
    %619 = vrot.lane.b32.xlu0 %v614, 64
    %v620 = vpop.permute.xlu0 %619
    %v623 = vmul.f32 %v583, %v618
    %v624 = vmul.f32 %v584, %v620
    %v627 = vrot.slane %v623, 2
    %v628 = vrot.slane %v624, 1
    %v629 = vsel %vm366, %v628, %v627
    %630 = vrot.lane.b32.xlu0 %v629, 32
    %v631 = vpop.permute.xlu0 %630
    %v632 = vsel %vm79, %v631, 0
    %634 = vmatprep.subr.mxu0 0.0
    %635 = vmatpush1.msra.mxu0 0.0
    %636 = vmatprep.subr.mxu0 0.0
    %637 = vmatpush1.msra.mxu0 0.0
    %638 = vmatprep.subr.mxu0 0.0
    %639 = vmatpush1.msra.mxu0 0.0
    %640 = vmatprep.subr.mxu0 0.0
    %641 = vmatpush1.msra.mxu0 0.0
    %642 = vmatprep.subr.mxu0 0.0
    %643 = vmatpush1.msra.mxu0 0.0
    %644 = vmatprep.subr.mxu0 0.0
    %645 = vmatpush1.msra.mxu0 0.0
    %646 = vmatprep.subr.mxu0 0.0
    %647 = vmatpush1.msra.mxu0 0.0
    %648 = vmatprep.subr.mxu0 0.0
    %649 = vmatpush1.msra.mxu0 0.0
    %650 = vmatprep.subr.mxu0 0.0
    %651 = vmatpush1.msra.mxu0 0.0
    %652 = vmatprep.subr.mxu0 0.0
    %653 = vmatpush1.msra.mxu0 0.0
    %654 = vmatprep.subr.mxu0 0.0
    %655 = vmatpush1.msra.mxu0 0.0
    %656 = vmatprep.subr.mxu0 0.0
    %657 = vmatpush1.msra.mxu0 0.0
    %658 = vmatprep.subr.mxu0 0.0
    %659 = vmatpush1.msra.mxu0 %v231
    %660 = vmatprep.subr.mxu0 0.0
    %661 = vmatpush1.msra.mxu0 %v230
    %662 = vmatprep.subr.mxu0 0.0
    %663 = vmatpush1.msra.mxu0 %v229
    %664 = vmatprep.subr.mxu0 0.0
    %665 = vmatpush1.msra.mxu0 %v228
    %666 = vmatprep.subr.mxu0 0.0
    %667 = vmatpush2.msra.mxu0 0.0
    %668 = vmatprep.subr.mxu0 0.0
    %669 = vmatpush2.msra.mxu0 0.0
    %670 = vmatprep.subr.mxu0 0.0
    %671 = vmatpush2.msra.mxu0 0.0
    %672 = vmatprep.subr.mxu0 0.0
    %673 = vmatpush2.msra.mxu0 0.0
    %674 = vmatprep.subr.mxu0 0.0
    %675 = vmatpush2.msra.mxu0 0.0
    %676 = vmatprep.subr.mxu0 0.0
    %677 = vmatpush2.msra.mxu0 0.0
    %678 = vmatprep.subr.mxu0 0.0
    %679 = vmatpush2.msra.mxu0 0.0
    %680 = vmatprep.subr.mxu0 0.0
    %681 = vmatpush2.msra.mxu0 0.0
    %682 = vmatprep.subr.mxu0 0.0
    %683 = vmatpush2.msra.mxu0 0.0
    %684 = vmatprep.subr.mxu0 0.0
    %685 = vmatpush2.msra.mxu0 0.0
    %686 = vmatprep.subr.mxu0 0.0
    %687 = vmatpush2.msra.mxu0 0.0
    %688 = vmatprep.subr.mxu0 0.0
    %689 = vmatpush2.msra.mxu0 0.0
    %690 = vmatprep.subr.mxu0 0.0
    %691 = vmatpush2.msra.mxu0 0.0
    %692 = vmatprep.subr.mxu0 0.0
    %693 = vmatpush2.msra.mxu0 0.0
    %694 = vmatprep.subr.mxu0 0.0
    %695 = vmatpush2.msra.mxu0 0.0
    %696 = vmatprep.subr.mxu0 0.0
    %697 = vmatpush2.msra.mxu0 0.0
    %698 = vmatprep.mubr.f32.mxu0 0.0
    %699 = vmatmul.mubr.f32.gmra.mxu0 %v632
    %v700 = vpop.f32.mrf.mxu0
    %v701 = vadd.f32 0.0, %v700
    %v702 = vpop.f32.mrf.mxu0
    %703 = vdwg.mxu0
    %v705 = vrot.slane %v701, 5
    %v706 = vrot.slane %v701, 6
    %v709 = vadd.f32 %v234, %v705
    %v710 = vadd.f32 %v235, %v706
    %v711 = vtanh.pop %v709
    %v712 = vtanh.pop %v710
    %v713 = vmul.f32 %v711, 0.5
    %v714 = vmul.f32 %v712, 0.5
    %v715 = vadd.f32 %v713, 0.5
    %v716 = vadd.f32 %v714, 0.5
    %v719 = vrot.slane %v611, 7
    %v720 = vrot.slane %v612, 7
    %v723 = vmul.f32 %v715, %v719
    %v724 = vmul.f32 %v716, %v720
    %727 = vrot.lane.b32.xlu0 %v711, 64
    %v728 = vpop.permute.xlu0 %727
    %729 = vrot.lane.b32.xlu0 %v712, 64
    %v730 = vpop.permute.xlu0 %729
    %v733 = vmul.f32 %v715, %v728
    %v734 = vmul.f32 %v716, %v730
    %737 = vrot.lane.b32.xlu0 %v733, 32
    %v738 = vpop.permute.xlu0 %737
    %739 = vrot.lane.b32.xlu0 %v734, 32
    %v740 = vpop.permute.xlu0 %739
    %v743 = vadd.f32 %v723, %v738
    %v744 = vadd.f32 %v724, %v740
    %v745 = vtanh.pop %v743
    %v746 = vtanh.pop %v744
    %749 = vrot.lane.b32.xlu0 %v745, 64
    %v750 = vpop.permute.xlu0 %749
    %751 = vrot.lane.b32.xlu0 %v746, 64
    %v752 = vpop.permute.xlu0 %751
    %v755 = vmul.f32 %v715, %v750
    %v756 = vmul.f32 %v716, %v752
    %758 = vrot.lane.b32.xlu0 %v497, 64
    %v759 = vpop.permute.xlu0 %758
    %761 = vrot.lane.b32.xlu0 %v629, 96
    %v762 = vpop.permute.xlu0 %761
    %v766 = vrot.slane %v755, 3
    %v767 = vrot.slane %v756, 2
    %v768 = vsel %vm366, %v767, %v766
    %v770 = vsel %vm79, %v369, %v759
    %vm771 = vcmask 523264
    %v772 = vsel %vm771, %v770, %v762
    %vm773 = vcmask 785408
    %v774 = vsel %vm773, %v772, %v768
    %v777 = vunpack.c.l.s4 1966171168
    %v778 = vunpack.c.0.s8 %v777
    %v779 = vlaneseq
    %v780 = vshrl.u32 %v779, 7
    %v781 = vsub.s32 %v778, %v780
    %v782 = vrot.slane %v774, %v781
    %v783 = vcombine.high %v782, %v782
    %v785 = vunpack.c.l.s4 1966171168
    %v786 = vunpack.c.0.s8 %v785
    %v787 = vlaneseq
    %v788 = vshrl.u32 %v787, 7
    %v789 = vsub.s32 %v786, %v788
    %v790 = vrot.slane %v782, %v789
    %v792 = vunpack.c.l.s4 1966171168
    %v793 = vunpack.c.0.s8 %v792
    %v794 = vlaneseq
    %v795 = vshrl.u32 %v794, 7
    %v796 = vsub.s32 %v793, %v795
    %v797 = vrot.slane %v783, %v796
    %800 = vst [vmem:[#allocation11] sm:$0x1] %v790
    %801 = vst [vmem:[#allocation11 + $0x2] sm:$0x1] %v797
    %s802 = scalar_lea.vmem [#allocation2], 4
    %v803 = vld [vmem:[%s802] sm:$0xf]
    %v804 = vld [vmem:[%s802 + $0x8] sm:$0xf]
    %805 = vrot.lane.b32.xlu0 %v768, 32
    %v806 = vpop.permute.xlu0 %805
    %v807 = vsel %vm79, %v806, 0
    %809 = vmatprep.subr.mxu0 0.0
    %810 = vmatpush1.msra.mxu0 0.0
    %811 = vmatprep.subr.mxu0 0.0
    %812 = vmatpush1.msra.mxu0 0.0
    %813 = vmatprep.subr.mxu0 0.0
    %814 = vmatpush1.msra.mxu0 0.0
    %815 = vmatprep.subr.mxu0 0.0
    %816 = vmatpush1.msra.mxu0 0.0
    %817 = vmatprep.subr.mxu0 0.0
    %818 = vmatpush1.msra.mxu0 0.0
    %819 = vmatprep.subr.mxu0 0.0
    %820 = vmatpush1.msra.mxu0 0.0
    %821 = vmatprep.subr.mxu0 0.0
    %822 = vmatpush1.msra.mxu0 0.0
    %823 = vmatprep.subr.mxu0 0.0
    %824 = vmatpush1.msra.mxu0 0.0
    %825 = vmatprep.subr.mxu0 0.0
    %826 = vmatpush1.msra.mxu0 0.0
    %827 = vmatprep.subr.mxu0 0.0
    %828 = vmatpush1.msra.mxu0 0.0
    %829 = vmatprep.subr.mxu0 0.0
    %830 = vmatpush1.msra.mxu0 0.0
    %831 = vmatprep.subr.mxu0 0.0
    %832 = vmatpush1.msra.mxu0 0.0
    %833 = vmatprep.subr.mxu0 0.0
    %834 = vmatpush1.msra.mxu0 %v231
    %835 = vmatprep.subr.mxu0 0.0
    %836 = vmatpush1.msra.mxu0 %v230
    %837 = vmatprep.subr.mxu0 0.0
    %838 = vmatpush1.msra.mxu0 %v229
    %839 = vmatprep.subr.mxu0 0.0
    %840 = vmatpush1.msra.mxu0 %v228
    %841 = vmatprep.subr.mxu0 0.0
    %842 = vmatpush2.msra.mxu0 0.0
    %843 = vmatprep.subr.mxu0 0.0
    %844 = vmatpush2.msra.mxu0 0.0
    %845 = vmatprep.subr.mxu0 0.0
    %846 = vmatpush2.msra.mxu0 0.0
    %847 = vmatprep.subr.mxu0 0.0
    %848 = vmatpush2.msra.mxu0 0.0
    %849 = vmatprep.subr.mxu0 0.0
    %850 = vmatpush2.msra.mxu0 0.0
    %851 = vmatprep.subr.mxu0 0.0
    %852 = vmatpush2.msra.mxu0 0.0
    %853 = vmatprep.subr.mxu0 0.0
    %854 = vmatpush2.msra.mxu0 0.0
    %855 = vmatprep.subr.mxu0 0.0
    %856 = vmatpush2.msra.mxu0 0.0
    %857 = vmatprep.subr.mxu0 0.0
    %858 = vmatpush2.msra.mxu0 0.0
    %859 = vmatprep.subr.mxu0 0.0
    %860 = vmatpush2.msra.mxu0 0.0
    %861 = vmatprep.subr.mxu0 0.0
    %862 = vmatpush2.msra.mxu0 0.0
    %863 = vmatprep.subr.mxu0 0.0
    %864 = vmatpush2.msra.mxu0 0.0
    %865 = vmatprep.subr.mxu0 0.0
    %866 = vmatpush2.msra.mxu0 0.0
    %867 = vmatprep.subr.mxu0 0.0
    %868 = vmatpush2.msra.mxu0 0.0
    %869 = vmatprep.subr.mxu0 0.0
    %870 = vmatpush2.msra.mxu0 0.0
    %871 = vmatprep.subr.mxu0 0.0
    %872 = vmatpush2.msra.mxu0 0.0
    %873 = vmatprep.mubr.f32.mxu0 0.0
    %874 = vmatmul.mubr.f32.gmra.mxu0 %v807
    %v875 = vpop.f32.mrf.mxu0
    %v876 = vadd.f32 0.0, %v875
    %v877 = vpop.f32.mrf.mxu0
    %878 = vdwg.mxu0
    %v880 = vrot.slane %v876, 1
    %v883 = vadd.f32 %v803, %v876
    %v884 = vadd.f32 %v804, %v880
    %v885 = vtanh.pop %v883
    %v886 = vtanh.pop %v884
    %v887 = vmul.f32 %v885, 0.5
    %v888 = vmul.f32 %v886, 0.5
    %v889 = vadd.f32 %v887, 0.5
    %v890 = vadd.f32 %v888, 0.5
    %v893 = vrot.slane %v743, 3
    %v894 = vrot.slane %v744, 3
    %v897 = vmul.f32 %v889, %v893
    %v898 = vmul.f32 %v890, %v894
    %901 = vrot.lane.b32.xlu0 %v885, 64
    %v902 = vpop.permute.xlu0 %901
    %903 = vrot.lane.b32.xlu0 %v886, 64
    %v904 = vpop.permute.xlu0 %903
    %v907 = vmul.f32 %v889, %v902
    %v908 = vmul.f32 %v890, %v904
    %911 = vrot.lane.b32.xlu0 %v907, 32
    %v912 = vpop.permute.xlu0 %911
    %913 = vrot.lane.b32.xlu0 %v908, 32
    %v914 = vpop.permute.xlu0 %913
    %v917 = vadd.f32 %v897, %v912
    %v918 = vadd.f32 %v898, %v914
    %v919 = vtanh.pop %v917
    %v920 = vtanh.pop %v918
    %923 = vrot.lane.b32.xlu0 %v919, 64
    %v924 = vpop.permute.xlu0 %923
    %925 = vrot.lane.b32.xlu0 %v920, 64
    %v926 = vpop.permute.xlu0 %925
    %v929 = vmul.f32 %v889, %v924
    %v930 = vmul.f32 %v890, %v926
    %v933 = vrot.slane %v930, 7
    %v934 = vsel %vm366, %v933, %v929
    %935 = vrot.lane.b32.xlu0 %v934, 32
    %v936 = vpop.permute.xlu0 %935
    %v937 = vsel %vm79, %v936, 0
    %939 = vmatprep.subr.mxu0 0.0
    %940 = vmatpush1.msra.mxu0 0.0
    %941 = vmatprep.subr.mxu0 0.0
    %942 = vmatpush1.msra.mxu0 0.0
    %943 = vmatprep.subr.mxu0 0.0
    %944 = vmatpush1.msra.mxu0 0.0
    %945 = vmatprep.subr.mxu0 0.0
    %946 = vmatpush1.msra.mxu0 0.0
    %947 = vmatprep.subr.mxu0 0.0
    %948 = vmatpush1.msra.mxu0 0.0
    %949 = vmatprep.subr.mxu0 0.0
    %950 = vmatpush1.msra.mxu0 0.0
    %951 = vmatprep.subr.mxu0 0.0
    %952 = vmatpush1.msra.mxu0 0.0
    %953 = vmatprep.subr.mxu0 0.0
    %954 = vmatpush1.msra.mxu0 0.0
    %955 = vmatprep.subr.mxu0 0.0
    %956 = vmatpush1.msra.mxu0 0.0
    %957 = vmatprep.subr.mxu0 0.0
    %958 = vmatpush1.msra.mxu0 0.0
    %959 = vmatprep.subr.mxu0 0.0
    %960 = vmatpush1.msra.mxu0 0.0
    %961 = vmatprep.subr.mxu0 0.0
    %962 = vmatpush1.msra.mxu0 0.0
    %963 = vmatprep.subr.mxu0 0.0
    %964 = vmatpush1.msra.mxu0 %v231
    %965 = vmatprep.subr.mxu0 0.0
    %966 = vmatpush1.msra.mxu0 %v230
    %967 = vmatprep.subr.mxu0 0.0
    %968 = vmatpush1.msra.mxu0 %v229
    %969 = vmatprep.subr.mxu0 0.0
    %970 = vmatpush1.msra.mxu0 %v228
    %971 = vmatprep.subr.mxu0 0.0
    %972 = vmatpush2.msra.mxu0 0.0
    %973 = vmatprep.subr.mxu0 0.0
    %974 = vmatpush2.msra.mxu0 0.0
    %975 = vmatprep.subr.mxu0 0.0
    %976 = vmatpush2.msra.mxu0 0.0
    %977 = vmatprep.subr.mxu0 0.0
    %978 = vmatpush2.msra.mxu0 0.0
    %979 = vmatprep.subr.mxu0 0.0
    %980 = vmatpush2.msra.mxu0 0.0
    %981 = vmatprep.subr.mxu0 0.0
    %982 = vmatpush2.msra.mxu0 0.0
    %983 = vmatprep.subr.mxu0 0.0
    %984 = vmatpush2.msra.mxu0 0.0
    %985 = vmatprep.subr.mxu0 0.0
    %986 = vmatpush2.msra.mxu0 0.0
    %987 = vmatprep.subr.mxu0 0.0
    %988 = vmatpush2.msra.mxu0 0.0
    %989 = vmatprep.subr.mxu0 0.0
    %990 = vmatpush2.msra.mxu0 0.0
    %991 = vmatprep.subr.mxu0 0.0
    %992 = vmatpush2.msra.mxu0 0.0
    %993 = vmatprep.subr.mxu0 0.0
    %994 = vmatpush2.msra.mxu0 0.0
    %995 = vmatprep.subr.mxu0 0.0
    %996 = vmatpush2.msra.mxu0 0.0
    %997 = vmatprep.subr.mxu0 0.0
    %998 = vmatpush2.msra.mxu0 0.0
    %999 = vmatprep.subr.mxu0 0.0
    %1000 = vmatpush2.msra.mxu0 0.0
    %1001 = vmatprep.subr.mxu0 0.0
    %1002 = vmatpush2.msra.mxu0 0.0
    %1003 = vmatprep.mubr.f32.mxu0 0.0
    %1004 = vmatmul.mubr.f32.gmra.mxu0 %v937
    %v1005 = vpop.f32.mrf.mxu0
    %v1006 = vadd.f32 0.0, %v1005
    %v1007 = vpop.f32.mrf.mxu0
    %1008 = vdwg.mxu0
    %v1010 = vrot.slane %v1006, 7
    %v1013 = vadd.f32 %v803, %v1010
    %v1014 = vadd.f32 %v804, %v1006
    %v1015 = vtanh.pop %v1013
    %v1016 = vtanh.pop %v1014
    %v1017 = vmul.f32 %v1015, 0.5
    %v1018 = vmul.f32 %v1016, 0.5
    %v1019 = vadd.f32 %v1017, 0.5
    %v1020 = vadd.f32 %v1018, 0.5
    %v1023 = vrot.slane %v917, 7
    %v1024 = vrot.slane %v918, 7
    %v1027 = vmul.f32 %v1019, %v1023
    %v1028 = vmul.f32 %v1020, %v1024
    %1031 = vrot.lane.b32.xlu0 %v1015, 64
    %v1032 = vpop.permute.xlu0 %1031
    %1033 = vrot.lane.b32.xlu0 %v1016, 64
    %v1034 = vpop.permute.xlu0 %1033
    %v1037 = vmul.f32 %v1019, %v1032
    %v1038 = vmul.f32 %v1020, %v1034
    %1041 = vrot.lane.b32.xlu0 %v1037, 32
    %v1042 = vpop.permute.xlu0 %1041
    %1043 = vrot.lane.b32.xlu0 %v1038, 32
    %v1044 = vpop.permute.xlu0 %1043
    %v1047 = vadd.f32 %v1027, %v1042
    %v1048 = vadd.f32 %v1028, %v1044
    %v1049 = vtanh.pop %v1047
    %v1050 = vtanh.pop %v1048
    %1053 = vrot.lane.b32.xlu0 %v1049, 64
    %v1054 = vpop.permute.xlu0 %1053
    %1055 = vrot.lane.b32.xlu0 %v1050, 64
    %v1056 = vpop.permute.xlu0 %1055
    %v1059 = vmul.f32 %v1019, %v1054
    %v1060 = vmul.f32 %v1020, %v1056
    %v1063 = vrot.slane %v1059, 1
    %v1064 = vsel %vm366, %v1060, %v1063
    %1065 = vrot.lane.b32.xlu0 %v1064, 32
    %v1066 = vpop.permute.xlu0 %1065
    %v1067 = vsel %vm79, %v1066, 0
    %1069 = vmatprep.subr.mxu0 0.0
    %1070 = vmatpush1.msra.mxu0 0.0
    %1071 = vmatprep.subr.mxu0 0.0
    %1072 = vmatpush1.msra.mxu0 0.0
    %1073 = vmatprep.subr.mxu0 0.0
    %1074 = vmatpush1.msra.mxu0 0.0
    %1075 = vmatprep.subr.mxu0 0.0
    %1076 = vmatpush1.msra.mxu0 0.0
    %1077 = vmatprep.subr.mxu0 0.0
    %1078 = vmatpush1.msra.mxu0 0.0
    %1079 = vmatprep.subr.mxu0 0.0
    %1080 = vmatpush1.msra.mxu0 0.0
    %1081 = vmatprep.subr.mxu0 0.0
    %1082 = vmatpush1.msra.mxu0 0.0
    %1083 = vmatprep.subr.mxu0 0.0
    %1084 = vmatpush1.msra.mxu0 0.0
    %1085 = vmatprep.subr.mxu0 0.0
    %1086 = vmatpush1.msra.mxu0 0.0
    %1087 = vmatprep.subr.mxu0 0.0
    %1088 = vmatpush1.msra.mxu0 0.0
    %1089 = vmatprep.subr.mxu0 0.0
    %1090 = vmatpush1.msra.mxu0 0.0
    %1091 = vmatprep.subr.mxu0 0.0
    %1092 = vmatpush1.msra.mxu0 0.0
    %1093 = vmatprep.subr.mxu0 0.0
    %1094 = vmatpush1.msra.mxu0 %v231
    %1095 = vmatprep.subr.mxu0 0.0
    %1096 = vmatpush1.msra.mxu0 %v230
    %1097 = vmatprep.subr.mxu0 0.0
    %1098 = vmatpush1.msra.mxu0 %v229
    %1099 = vmatprep.subr.mxu0 0.0
    %1100 = vmatpush1.msra.mxu0 %v228
    %1101 = vmatprep.subr.mxu0 0.0
    %1102 = vmatpush2.msra.mxu0 0.0
    %1103 = vmatprep.subr.mxu0 0.0
    %1104 = vmatpush2.msra.mxu0 0.0
    %1105 = vmatprep.subr.mxu0 0.0
    %1106 = vmatpush2.msra.mxu0 0.0
    %1107 = vmatprep.subr.mxu0 0.0
    %1108 = vmatpush2.msra.mxu0 0.0
    %1109 = vmatprep.subr.mxu0 0.0
    %1110 = vmatpush2.msra.mxu0 0.0
    %1111 = vmatprep.subr.mxu0 0.0
    %1112 = vmatpush2.msra.mxu0 0.0
    %1113 = vmatprep.subr.mxu0 0.0
    %1114 = vmatpush2.msra.mxu0 0.0
    %1115 = vmatprep.subr.mxu0 0.0
    %1116 = vmatpush2.msra.mxu0 0.0
    %1117 = vmatprep.subr.mxu0 0.0
    %1118 = vmatpush2.msra.mxu0 0.0
    %1119 = vmatprep.subr.mxu0 0.0
    %1120 = vmatpush2.msra.mxu0 0.0
    %1121 = vmatprep.subr.mxu0 0.0
    %1122 = vmatpush2.msra.mxu0 0.0
    %1123 = vmatprep.subr.mxu0 0.0
    %1124 = vmatpush2.msra.mxu0 0.0
    %1125 = vmatprep.subr.mxu0 0.0
    %1126 = vmatpush2.msra.mxu0 0.0
    %1127 = vmatprep.subr.mxu0 0.0
    %1128 = vmatpush2.msra.mxu0 0.0
    %1129 = vmatprep.subr.mxu0 0.0
    %1130 = vmatpush2.msra.mxu0 0.0
    %1131 = vmatprep.subr.mxu0 0.0
    %1132 = vmatpush2.msra.mxu0 0.0
    %1133 = vmatprep.mubr.f32.mxu0 0.0
    %1134 = vmatmul.mubr.f32.gmra.mxu0 %v1067
    %v1135 = vpop.f32.mrf.mxu0
    %v1136 = vadd.f32 0.0, %v1135
    %v1137 = vpop.f32.mrf.mxu0
    %1138 = vdwg.mxu0
    %v1140 = vrot.slane %v1136, 6
    %v1141 = vrot.slane %v1136, 7
    %v1144 = vadd.f32 %v803, %v1140
    %v1145 = vadd.f32 %v804, %v1141
    %v1146 = vtanh.pop %v1144
    %v1147 = vtanh.pop %v1145
    %v1148 = vmul.f32 %v1146, 0.5
    %v1149 = vmul.f32 %v1147, 0.5
    %v1150 = vadd.f32 %v1148, 0.5
    %v1151 = vadd.f32 %v1149, 0.5
    %v1154 = vrot.slane %v1047, 7
    %v1155 = vrot.slane %v1048, 7
    %v1158 = vmul.f32 %v1150, %v1154
    %v1159 = vmul.f32 %v1151, %v1155
    %1162 = vrot.lane.b32.xlu0 %v1146, 64
    %v1163 = vpop.permute.xlu0 %1162
    %1164 = vrot.lane.b32.xlu0 %v1147, 64
    %v1165 = vpop.permute.xlu0 %1164
    %v1168 = vmul.f32 %v1150, %v1163
    %v1169 = vmul.f32 %v1151, %v1165
    %1172 = vrot.lane.b32.xlu0 %v1168, 32
    %v1173 = vpop.permute.xlu0 %1172
    %1174 = vrot.lane.b32.xlu0 %v1169, 32
    %v1175 = vpop.permute.xlu0 %1174
    %v1178 = vadd.f32 %v1158, %v1173
    %v1179 = vadd.f32 %v1159, %v1175
    %v1180 = vtanh.pop %v1178
    %v1181 = vtanh.pop %v1179
    %1184 = vrot.lane.b32.xlu0 %v1180, 64
    %v1185 = vpop.permute.xlu0 %1184
    %1186 = vrot.lane.b32.xlu0 %v1181, 64
    %v1187 = vpop.permute.xlu0 %1186
    %v1190 = vmul.f32 %v1150, %v1185
    %v1191 = vmul.f32 %v1151, %v1187
    %v1194 = vrot.slane %v1190, 2
    %v1195 = vrot.slane %v1191, 1
    %v1196 = vsel %vm366, %v1195, %v1194
    %1197 = vrot.lane.b32.xlu0 %v1196, 32
    %v1198 = vpop.permute.xlu0 %1197
    %v1199 = vsel %vm79, %v1198, 0
    %1201 = vmatprep.subr.mxu0 0.0
    %1202 = vmatpush1.msra.mxu0 0.0
    %1203 = vmatprep.subr.mxu0 0.0
    %1204 = vmatpush1.msra.mxu0 0.0
    %1205 = vmatprep.subr.mxu0 0.0
    %1206 = vmatpush1.msra.mxu0 0.0
    %1207 = vmatprep.subr.mxu0 0.0
    %1208 = vmatpush1.msra.mxu0 0.0
    %1209 = vmatprep.subr.mxu0 0.0
    %1210 = vmatpush1.msra.mxu0 0.0
    %1211 = vmatprep.subr.mxu0 0.0
    %1212 = vmatpush1.msra.mxu0 0.0
    %1213 = vmatprep.subr.mxu0 0.0
    %1214 = vmatpush1.msra.mxu0 0.0
    %1215 = vmatprep.subr.mxu0 0.0
    %1216 = vmatpush1.msra.mxu0 0.0
    %1217 = vmatprep.subr.mxu0 0.0
    %1218 = vmatpush1.msra.mxu0 0.0
    %1219 = vmatprep.subr.mxu0 0.0
    %1220 = vmatpush1.msra.mxu0 0.0
    %1221 = vmatprep.subr.mxu0 0.0
    %1222 = vmatpush1.msra.mxu0 0.0
    %1223 = vmatprep.subr.mxu0 0.0
    %1224 = vmatpush1.msra.mxu0 0.0
    %1225 = vmatprep.subr.mxu0 0.0
    %1226 = vmatpush1.msra.mxu0 %v231
    %1227 = vmatprep.subr.mxu0 0.0
    %1228 = vmatpush1.msra.mxu0 %v230
    %1229 = vmatprep.subr.mxu0 0.0
    %1230 = vmatpush1.msra.mxu0 %v229
    %1231 = vmatprep.subr.mxu0 0.0
    %1232 = vmatpush1.msra.mxu0 %v228
    %1233 = vmatprep.subr.mxu0 0.0
    %1234 = vmatpush2.msra.mxu0 0.0
    %1235 = vmatprep.subr.mxu0 0.0
    %1236 = vmatpush2.msra.mxu0 0.0
    %1237 = vmatprep.subr.mxu0 0.0
    %1238 = vmatpush2.msra.mxu0 0.0
    %1239 = vmatprep.subr.mxu0 0.0
    %1240 = vmatpush2.msra.mxu0 0.0
    %1241 = vmatprep.subr.mxu0 0.0
    %1242 = vmatpush2.msra.mxu0 0.0
    %1243 = vmatprep.subr.mxu0 0.0
    %1244 = vmatpush2.msra.mxu0 0.0
    %1245 = vmatprep.subr.mxu0 0.0
    %1246 = vmatpush2.msra.mxu0 0.0
    %1247 = vmatprep.subr.mxu0 0.0
    %1248 = vmatpush2.msra.mxu0 0.0
    %1249 = vmatprep.subr.mxu0 0.0
    %1250 = vmatpush2.msra.mxu0 0.0
    %1251 = vmatprep.subr.mxu0 0.0
    %1252 = vmatpush2.msra.mxu0 0.0
    %1253 = vmatprep.subr.mxu0 0.0
    %1254 = vmatpush2.msra.mxu0 0.0
    %1255 = vmatprep.subr.mxu0 0.0
    %1256 = vmatpush2.msra.mxu0 0.0
    %1257 = vmatprep.subr.mxu0 0.0
    %1258 = vmatpush2.msra.mxu0 0.0
    %1259 = vmatprep.subr.mxu0 0.0
    %1260 = vmatpush2.msra.mxu0 0.0
    %1261 = vmatprep.subr.mxu0 0.0
    %1262 = vmatpush2.msra.mxu0 0.0
    %1263 = vmatprep.subr.mxu0 0.0
    %1264 = vmatpush2.msra.mxu0 0.0
    %1265 = vmatprep.mubr.f32.mxu0 0.0
    %1266 = vmatmul.mubr.f32.gmra.mxu0 %v1199
    %v1267 = vpop.f32.mrf.mxu0
    %v1268 = vadd.f32 0.0, %v1267
    %v1269 = vpop.f32.mrf.mxu0
    %1270 = vdwg.mxu0
    %v1272 = vrot.slane %v1268, 5
    %v1273 = vrot.slane %v1268, 6
    %v1276 = vadd.f32 %v803, %v1272
    %v1277 = vadd.f32 %v804, %v1273
    %v1278 = vtanh.pop %v1276
    %v1279 = vtanh.pop %v1277
    %v1280 = vmul.f32 %v1278, 0.5
    %v1281 = vmul.f32 %v1279, 0.5
    %v1282 = vadd.f32 %v1280, 0.5
    %v1283 = vadd.f32 %v1281, 0.5
    %v1286 = vrot.slane %v1178, 7
    %v1287 = vrot.slane %v1179, 7
    %v1290 = vmul.f32 %v1282, %v1286
    %v1291 = vmul.f32 %v1283, %v1287
    %1294 = vrot.lane.b32.xlu0 %v1278, 64
    %v1295 = vpop.permute.xlu0 %1294
    %1296 = vrot.lane.b32.xlu0 %v1279, 64
    %v1297 = vpop.permute.xlu0 %1296
    %v1300 = vmul.f32 %v1282, %v1295
    %v1301 = vmul.f32 %v1283, %v1297
    %1304 = vrot.lane.b32.xlu0 %v1300, 32
    %v1305 = vpop.permute.xlu0 %1304
    %1306 = vrot.lane.b32.xlu0 %v1301, 32
    %v1307 = vpop.permute.xlu0 %1306
    %v1310 = vadd.f32 %v1290, %v1305
    %v1311 = vadd.f32 %v1291, %v1307
    %v1312 = vtanh.pop %v1310
    %v1313 = vtanh.pop %v1311
    %1316 = vrot.lane.b32.xlu0 %v1312, 64
    %v1317 = vpop.permute.xlu0 %1316
    %1318 = vrot.lane.b32.xlu0 %v1313, 64
    %v1319 = vpop.permute.xlu0 %1318
    %v1322 = vmul.f32 %v1282, %v1317
    %v1323 = vmul.f32 %v1283, %v1319
    %1325 = vrot.lane.b32.xlu0 %v1064, 64
    %v1326 = vpop.permute.xlu0 %1325
    %1328 = vrot.lane.b32.xlu0 %v1196, 96
    %v1329 = vpop.permute.xlu0 %1328
    %v1333 = vrot.slane %v1322, 3
    %v1334 = vrot.slane %v1323, 2
    %v1335 = vsel %vm366, %v1334, %v1333
    %v1337 = vsel %vm79, %v936, %v1326
    %v1338 = vsel %vm771, %v1337, %v1329
    %v1339 = vsel %vm773, %v1338, %v1335
    %v1342 = vunpack.c.l.s4 1966171168
    %v1343 = vunpack.c.0.s8 %v1342
    %v1344 = vlaneseq
    %v1345 = vshrl.u32 %v1344, 7
    %v1346 = vsub.s32 %v1343, %v1345
    %v1347 = vrot.slane %v1339, %v1346
    %v1348 = vcombine.high %v1347, %v1347
    %v1350 = vunpack.c.l.s4 1966171168
    %v1351 = vunpack.c.0.s8 %v1350
    %v1352 = vlaneseq
    %v1353 = vshrl.u32 %v1352, 7
    %v1354 = vsub.s32 %v1351, %v1353
    %v1355 = vrot.slane %v1347, %v1354
    %v1357 = vunpack.c.l.s4 1966171168
    %v1358 = vunpack.c.0.s8 %v1357
    %v1359 = vlaneseq
    %v1360 = vshrl.u32 %v1359, 7
    %v1361 = vsub.s32 %v1358, %v1360
    %v1362 = vrot.slane %v1348, %v1361
    %1365 = vst [vmem:[#allocation11 + $0x1] sm:$0x1] %v1355
    %1366 = vst [vmem:[#allocation11 + $0x3] sm:$0x1] %v1362
    %v1367 = vrot.slane %v1323, 7
    %vm1368 = vcmask 1044484
    %v1369 = vsel %vm1368, %v1367, %v1322
    %1370 = vrot.lane.b32.xlu0 %v1369, 32
    %v1371 = vpop.permute.xlu0 %1370
    %vm1373 = vcmask 258051
    %1374 = vst.msk [vmem:[#allocation3 - $0x3] sm:$0x18] %vm1373, %v1371
    %v1377 = vrot.slane %v1311, 7
    %v1378 = vsel %vm1368, %v1377, %v1310
    %1379 = vrot.lane.b32.xlu0 %v1378, 96
    %v1380 = vpop.permute.xlu0 %1379
    %1382 = vst.msk [vmem:[#allocation4 - $0x3] sm:$0x18] %vm1373, %v1380
    // Predicated region
    $region34: #{tpu_custom_call.1} parent=1 // pred_check
      _
    $region35: #{tpu_custom_call.1} parent=1 // pred_check_branch
      %1384 = sbr.rel (0) target = $region37
    $region36: #{tpu_custom_call.1} parent=1 // pred_region
      %s1386 = ssub.s32 64, 64
      %1387 = vsyncadd [#allocation7], %s1386
      %s1388 = sshll.u32 [#allocation11], 4
      %s1389 = int_to_ptr.vmem [resolvable:$true] %s1388
      %1394 = dma.vmem_to_hbm [thread:$0]  %s1389, 64, %s4, [#allocation7], 32, 32, 2
    $region37: #{tpu_custom_call.1} parent=1 // pred_fallthru
      _
    // Predicated region
    $region38: #{tpu_custom_call.1} parent=1 // pred_check
      _
    $region39: #{tpu_custom_call.1} parent=1 // pred_check_branch
      %1396 = sbr.rel (0) target = $region41
    $region40: #{tpu_custom_call.1} parent=1 // pred_region
      %1397 = dma.done [#allocation7], 64
    $region41: #{tpu_custom_call.1} parent=1 // pred_fallthru
      _
    %1398 = vsyncpa [#allocation6], 1
    %1399 = vsyncpa [#allocation9], 1
    %1400 = vsyncpa [#allocation7], 1

</llo_original>
